<compile_context>
chip_gen: v5e
topology: v5e:2x2
jax: 0.10.0
libtpu: 0.0.40
codegen_flags: <defaults>
</compile_context>

<pallas_src>
import functools

import jax
import jax.numpy as jnp
from jax.experimental import pallas as pl
from jax.experimental.pallas import tpu as pltpu


_N_BLK_PARAMS = 11  # per-block refs: wih_T, whh_T, b, fc1_w, fc1_b, fc2_w, fc2_b, bn(g,b,m,v)


# ---------------------------------------------------------------------------
# Fused whole-model kernel
# ---------------------------------------------------------------------------

def _fused_model_kernel(*refs, e_layers, T, Bp, H):
    """Entire forward pass, resident in VMEM, single invocation (no grid)."""
    x_ref, tok_w_ref, tok_b_ref = refs[0:3]
    blk_refs = refs[3:3 + e_layers * _N_BLK_PARAMS]
    final_w_ref, final_b_ref, out_ref, seq_sc = refs[3 + e_layers * _N_BLK_PARAMS:]

    # Token embedding for all B*T rows in one MXU call: (T*Bp, D) @ (D, E) + b.
    cur = (jnp.dot(x_ref[...], tok_w_ref[...], preferred_element_type=jnp.float32)
           + tok_b_ref[...])                                       # (T*Bp, E)

    for l in range(e_layers):
        (wih_ref, whh_ref, b_ref, fc1_w_ref, fc1_b_ref, fc2_w_ref, fc2_b_ref,
         bn_g_ref, bn_b_ref, bn_m_ref, bn_v_ref) = blk_refs[
            l * _N_BLK_PARAMS:(l + 1) * _N_BLK_PARAMS]
        last_block = (l == e_layers - 1)

        # ---- SequenceBlock: single-layer unidirectional LSTM ----------------
        # Hoisted input projection for every time step at once.
        gates_x = (jnp.dot(cur, wih_ref[...], preferred_element_type=jnp.float32)
                   + b_ref[...])                                   # (T*Bp, 4H)
        whh = whh_ref[...]                                         # (H, 4H)

        h = jnp.zeros((Bp, H), jnp.float32)
        c = jnp.zeros((Bp, H), jnp.float32)
        for t in range(T):  # static unroll, T is small
            gates = gates_x[t * Bp:(t + 1) * Bp, :] + jnp.dot(
                h, whh, preferred_element_type=jnp.float32)        # (Bp, 4H)
            # Nonlinearities on the full 128-lane gates vreg, then static selects.
            sig = jax.nn.sigmoid(gates)
            th = jnp.tanh(gates)
            i_g = sig[:, 0 * H:1 * H]
            f_g = sig[:, 1 * H:2 * H]
            g_g = th[:, 2 * H:3 * H]
            o_g = sig[:, 3 * H:4 * H]
            c = f_g * c + i_g * g_g
            h = o_g * jnp.tanh(c)
            if not last_block:
                seq_sc[t * Bp:(t + 1) * Bp, :] = h

        # Only the last time step feeds the head, so the last block's cross-channel /
        # BN / residual path only needs the final hidden state.
        seq_out = h if last_block else seq_sc[...]

        # ---- CrossChannelBlock: fc1 -> ReLU -> (dropout=id) -> fc2 ----------
        h1 = jnp.maximum(
            jnp.dot(seq_out, fc1_w_ref[...], preferred_element_type=jnp.float32)
            + fc1_b_ref[...], 0.0)
        cross = (jnp.dot(h1, fc2_w_ref[...], preferred_element_type=jnp.float32)
                 + fc2_b_ref[...])

        # ---- BatchNorm1d (eval) + dropout(id) + residual ---------------------
        inv = jax.lax.rsqrt(bn_v_ref[...] + 1e-5)
        cur = (cross - bn_m_ref[...]) * inv * bn_g_ref[...] + bn_b_ref[...] + seq_out

    # Final head on the last time step (cur already holds only the last-step rows).
    # final_w is stored transposed as (1, H): elementwise multiply + lane reduce.
    out = (jnp.sum(cur * final_w_ref[...], axis=1, keepdims=True)
           + final_b_ref[...])                                     # (Bp, 1)
    out_ref[...] = out.astype(out_ref.dtype)


# ---------------------------------------------------------------------------
# Wrapper (layout plumbing only)
# ---------------------------------------------------------------------------

def model_forward(x, params):
    B, T, D_in = x.shape
    H = params["blocks"][0]["whh_T"].shape[0]
    e_layers = len(params["blocks"])

    Bp = max(8, -(-B // 8) * 8)       # pad batch to a sublane multiple
    Dp = max(8, -(-D_in // 8) * 8)    # pad input-feature dim for a clean MXU K dim

    # Pad + time-major flatten: (B, T, D) -> (T*Bp, Dp). Padded rows are throwaway
    # compute (no cross-row coupling anywhere: eval BN uses running stats only).
    x_p = jnp.pad(x.astype(jnp.float32), ((0, Bp - B), (0, 0), (0, Dp - D_in)))
    x_flat = jnp.transpose(x_p, (1, 0, 2)).reshape(T * Bp, Dp)
    tok_w = jnp.pad(params["tok_w"], ((0, Dp - D_in), (0, 0)))

    flat_blk = []
    for blk in params["blocks"]:
        flat_blk += [blk["wih_T"], blk["whh_T"], blk["b"],
                     blk["fc1_w"], blk["fc1_b"], blk["fc2_w"], blk["fc2_b"],
                     blk["bn_gamma"], blk["bn_beta"], blk["bn_mean"], blk["bn_var"]]

    n_in = 3 + e_layers * _N_BLK_PARAMS + 2
    vmem = pl.BlockSpec(memory_space=pltpu.MemorySpace.VMEM)

    out_p = pl.pallas_call(
        functools.partial(_fused_model_kernel, e_layers=e_layers, T=T, Bp=Bp, H=H),
        out_shape=jax.ShapeDtypeStruct((Bp, 1), jnp.float32),
        in_specs=[vmem] * n_in,
        out_specs=vmem,
        scratch_shapes=[pltpu.VMEM((T * Bp, H), jnp.float32)],   # per-block LSTM outputs
    )(x_flat, tok_w, params["tok_b"], *flat_blk,
      params["final_w"], params["final_b"])

    return out_p[:B][:, None, :]      # (B, 1, 1)


# ---------------------------------------------------------------------------
# Parameter construction (deterministic, synthetic)
# ---------------------------------------------------------------------------

def init_params(key, input_dim, d_model, hidden_d_model, e_layers):
    emb_dim = input_dim * d_model
    H = hidden_d_model

    def uniform(k, shape, scale):
        return jax.random.uniform(k, shape, jnp.float32, -scale, scale)

    keys = jax.random.split(key, 2 + 8 * e_layers)
    ki = iter(keys)

    params = {
        "tok_w": uniform(next(ki), (input_dim, emb_dim), 1.0 / (input_dim ** 0.5)),
        "tok_b": jnp.zeros((1, emb_dim), jnp.float32),
        "blocks": [],
        # Stored transposed: (1, H) so the head is a multiply + lane reduce.
        "final_w": uniform(next(ki), (1, H), 1.0 / (H ** 0.5)),
        "final_b": jnp.zeros((1, 1), jnp.float32),
    }

    in_dim = emb_dim
    for _ in range(e_layers):
        s = 1.0 / (H ** 0.5)
        b_ih = uniform(next(ki), (1, 4 * H), s)
        b_hh = uniform(next(ki), (1, 4 * H), s)
        blk = {
            # LSTM params pre-transposed: (D_in, 4H), (H, 4H); gate order (i, f, g, o).
            "wih_T": uniform(next(ki), (in_dim, 4 * H), s),
            "whh_T": uniform(next(ki), (H, 4 * H), s),
            "b": b_ih + b_hh,                      # PyTorch's b_ih + b_hh, combined
            # CrossChannelBlock MLP
            "fc1_w": uniform(next(ki), (H, H), s),
            "fc1_b": jnp.zeros((1, H), jnp.float32),
            "fc2_w": uniform(next(ki), (H, H), s),
            "fc2_b": jnp.zeros((1, H), jnp.float32),
            # BatchNorm1d (eval) params
            "bn_gamma": jnp.ones((1, H), jnp.float32),
            "bn_beta": jnp.zeros((1, H), jnp.float32),
            "bn_mean": jnp.zeros((1, H), jnp.float32),
            "bn_var": jnp.ones((1, H), jnp.float32),
        }
        params["blocks"].append(blk)
        in_dim = H
    return params


if __name__ == "__main__":
    # config: input_dim=4, d_model=8, hidden_d_model=32, seq_layers=1, e_layers=2,
    #         dropout=0.1, bidirectional=False, norm_type='batch', time_features=[]
    B, T, input_dim, d_model, hidden_d_model, e_layers = 2, 8, 4, 8, 32, 2

    key = jax.random.PRNGKey(0)
    kx, kp = jax.random.split(key)
    x = jax.random.normal(kx, (B, T, input_dim), dtype=jnp.float32)
    params = init_params(kp, input_dim, d_model, hidden_d_model, e_layers)

    fwd = jax.jit(model_forward)
    out = jax.block_until_ready(fwd(x, params))
    assert out.shape == (B, 1, 1), out.shape
    assert bool(jnp.all(jnp.isfinite(out)))
    print("KERNEL_OK")
</pallas_src>

<mosaic_0001>
module attributes {stable_mosaic.version = 11 : i64} {
  func.func @_fused_model_kernel(%arg0: memref<64x8xf32, #tpu.memory_space<vmem>>, %arg1: memref<8x32xf32, #tpu.memory_space<vmem>>, %arg2: memref<1x32xf32, #tpu.memory_space<vmem>>, %arg3: memref<32x128xf32, #tpu.memory_space<vmem>>, %arg4: memref<32x128xf32, #tpu.memory_space<vmem>>, %arg5: memref<1x128xf32, #tpu.memory_space<vmem>>, %arg6: memref<32x32xf32, #tpu.memory_space<vmem>>, %arg7: memref<1x32xf32, #tpu.memory_space<vmem>>, %arg8: memref<32x32xf32, #tpu.memory_space<vmem>>, %arg9: memref<1x32xf32, #tpu.memory_space<vmem>>, %arg10: memref<1x32xf32, #tpu.memory_space<vmem>>, %arg11: memref<1x32xf32, #tpu.memory_space<vmem>>, %arg12: memref<1x32xf32, #tpu.memory_space<vmem>>, %arg13: memref<1x32xf32, #tpu.memory_space<vmem>>, %arg14: memref<32x128xf32, #tpu.memory_space<vmem>>, %arg15: memref<32x128xf32, #tpu.memory_space<vmem>>, %arg16: memref<1x128xf32, #tpu.memory_space<vmem>>, %arg17: memref<32x32xf32, #tpu.memory_space<vmem>>, %arg18: memref<1x32xf32, #tpu.memory_space<vmem>>, %arg19: memref<32x32xf32, #tpu.memory_space<vmem>>, %arg20: memref<1x32xf32, #tpu.memory_space<vmem>>, %arg21: memref<1x32xf32, #tpu.memory_space<vmem>>, %arg22: memref<1x32xf32, #tpu.memory_space<vmem>>, %arg23: memref<1x32xf32, #tpu.memory_space<vmem>>, %arg24: memref<1x32xf32, #tpu.memory_space<vmem>>, %arg25: memref<1x32xf32, #tpu.memory_space<vmem>>, %arg26: memref<1x1xf32, #tpu.memory_space<vmem>>, %arg27: memref<8x1xf32, #tpu.memory_space<vmem>>, %arg28: memref<64x32xf32, #tpu.memory_space<vmem>>) attributes {dimension_semantics = [], scalar_prefetch = 0 : i64, scratch_operands = 1 : i64, tpu.core_type = #tpu.core_type<tc>} {
    %c0 = arith.constant 0 : index
    %c0_0 = arith.constant 0 : index
    %0 = vector.load %arg0[%c0, %c0_0] : memref<64x8xf32, #tpu.memory_space<vmem>>, vector<64x8xf32>
    %c0_1 = arith.constant 0 : index
    %c0_2 = arith.constant 0 : index
    %1 = vector.load %arg1[%c0_1, %c0_2] : memref<8x32xf32, #tpu.memory_space<vmem>>, vector<8x32xf32>
    %cst = arith.constant dense<0.000000e+00> : vector<64x32xf32>
    %2 = tpu.matmul %0, %1, %cst {dimension_numbers = #tpu.dot_dimension_numbers<[1], [0], [0], [1], [0, 0, 1, 1], [], []>} : vector<64x8xf32>, vector<8x32xf32>, vector<64x32xf32> -> vector<64x32xf32>
    %c0_3 = arith.constant 0 : index
    %c0_4 = arith.constant 0 : index
    %3 = vector.load %arg2[%c0_3, %c0_4] : memref<1x32xf32, #tpu.memory_space<vmem>>, vector<1x32xf32>
    %4 = vector.broadcast %3 : vector<1x32xf32> to vector<64x32xf32>
    %5 = arith.addf %2, %4 : vector<64x32xf32>
    %c0_5 = arith.constant 0 : index
    %c0_6 = arith.constant 0 : index
    %6 = vector.load %arg3[%c0_5, %c0_6] : memref<32x128xf32, #tpu.memory_space<vmem>>, vector<32x128xf32>
    %cst_7 = arith.constant dense<0.000000e+00> : vector<64x128xf32>
    %7 = tpu.matmul %5, %6, %cst_7 {dimension_numbers = #tpu.dot_dimension_numbers<[1], [0], [0], [1], [0, 0, 1, 1], [], []>} : vector<64x32xf32>, vector<32x128xf32>, vector<64x128xf32> -> vector<64x128xf32>
    %c0_8 = arith.constant 0 : index
    %c0_9 = arith.constant 0 : index
    %8 = vector.load %arg5[%c0_8, %c0_9] : memref<1x128xf32, #tpu.memory_space<vmem>>, vector<1x128xf32>
    %9 = vector.broadcast %8 : vector<1x128xf32> to vector<64x128xf32>
    %10 = arith.addf %7, %9 : vector<64x128xf32>
    %c0_10 = arith.constant 0 : index
    %c0_11 = arith.constant 0 : index
    %11 = vector.load %arg4[%c0_10, %c0_11] : memref<32x128xf32, #tpu.memory_space<vmem>>, vector<32x128xf32>
    %cst_12 = arith.constant 0.000000e+00 : f32
    %12 = vector.broadcast %cst_12 : f32 to vector<8x32xf32>
    %cst_13 = arith.constant 0.000000e+00 : f32
    %13 = vector.broadcast %cst_13 : f32 to vector<8x32xf32>
    %14 = vector.extract_strided_slice %10 {offsets = [0, 0], sizes = [8, 128], strides = [1, 1]} : vector<64x128xf32> to vector<8x128xf32>
    %cst_14 = arith.constant dense<0.000000e+00> : vector<8x128xf32>
    %15 = tpu.matmul %12, %11, %cst_14 {dimension_numbers = #tpu.dot_dimension_numbers<[1], [0], [0], [1], [0, 0, 1, 1], [], []>} : vector<8x32xf32>, vector<32x128xf32>, vector<8x128xf32> -> vector<8x128xf32>
    %16 = arith.addf %14, %15 : vector<8x128xf32>
    %17 = arith.negf %16 : vector<8x128xf32>
    %18 = math.exp %17 : vector<8x128xf32>
    %cst_15 = arith.constant 1.000000e+00 : f32
    %19 = vector.broadcast %cst_15 : f32 to vector<8x128xf32>
    %20 = arith.addf %19, %18 : vector<8x128xf32>
    %21 = arith.divf %19, %20 : vector<8x128xf32>
    %22 = math.tanh %16 : vector<8x128xf32>
    %23 = vector.extract_strided_slice %21 {offsets = [0, 0], sizes = [8, 32], strides = [1, 1]} : vector<8x128xf32> to vector<8x32xf32>
    %24 = vector.extract_strided_slice %21 {offsets = [0, 32], sizes = [8, 32], strides = [1, 1]} : vector<8x128xf32> to vector<8x32xf32>
    %25 = vector.extract_strided_slice %22 {offsets = [0, 64], sizes = [8, 32], strides = [1, 1]} : vector<8x128xf32> to vector<8x32xf32>
    %26 = vector.extract_strided_slice %21 {offsets = [0, 96], sizes = [8, 32], strides = [1, 1]} : vector<8x128xf32> to vector<8x32xf32>
    %27 = arith.mulf %24, %13 : vector<8x32xf32>
    %28 = arith.mulf %23, %25 : vector<8x32xf32>
    %29 = arith.addf %27, %28 : vector<8x32xf32>
    %30 = math.tanh %29 : vector<8x32xf32>
    %31 = arith.mulf %26, %30 : vector<8x32xf32>
    %c0_16 = arith.constant 0 : index
    %c0_17 = arith.constant 0 : index
    %32 = vector.load %arg28[%c0_16, %c0_17] : memref<64x32xf32, #tpu.memory_space<vmem>>, vector<8x32xf32>
    tpu.vector_store %arg28[%c0_16, %c0_17], %31 {strides = array<i32>} : memref<64x32xf32, #tpu.memory_space<vmem>>, vector<8x32xf32>,
    %33 = vector.extract_strided_slice %10 {offsets = [8, 0], sizes = [8, 128], strides = [1, 1]} : vector<64x128xf32> to vector<8x128xf32>
    %cst_18 = arith.constant dense<0.000000e+00> : vector<8x128xf32>
    %34 = tpu.matmul %31, %11, %cst_18 {dimension_numbers = #tpu.dot_dimension_numbers<[1], [0], [0], [1], [0, 0, 1, 1], [], []>} : vector<8x32xf32>, vector<32x128xf32>, vector<8x128xf32> -> vector<8x128xf32>
    %35 = arith.addf %33, %34 : vector<8x128xf32>
    %36 = arith.negf %35 : vector<8x128xf32>
    %37 = math.exp %36 : vector<8x128xf32>
    %cst_19 = arith.constant 1.000000e+00 : f32
    %38 = vector.broadcast %cst_19 : f32 to vector<8x128xf32>
    %39 = arith.addf %38, %37 : vector<8x128xf32>
    %40 = arith.divf %38, %39 : vector<8x128xf32>
    %41 = math.tanh %35 : vector<8x128xf32>
    %42 = vector.extract_strided_slice %40 {offsets = [0, 0], sizes = [8, 32], strides = [1, 1]} : vector<8x128xf32> to vector<8x32xf32>
    %43 = vector.extract_strided_slice %40 {offsets = [0, 32], sizes = [8, 32], strides = [1, 1]} : vector<8x128xf32> to vector<8x32xf32>
    %44 = vector.extract_strided_slice %41 {offsets = [0, 64], sizes = [8, 32], strides = [1, 1]} : vector<8x128xf32> to vector<8x32xf32>
    %45 = vector.extract_strided_slice %40 {offsets = [0, 96], sizes = [8, 32], strides = [1, 1]} : vector<8x128xf32> to vector<8x32xf32>
    %46 = arith.mulf %43, %29 : vector<8x32xf32>
    %47 = arith.mulf %42, %44 : vector<8x32xf32>
    %48 = arith.addf %46, %47 : vector<8x32xf32>
    %49 = math.tanh %48 : vector<8x32xf32>
    %50 = arith.mulf %45, %49 : vector<8x32xf32>
    %c8 = arith.constant 8 : index
    %c0_20 = arith.constant 0 : index
    %51 = vector.load %arg28[%c8, %c0_20] : memref<64x32xf32, #tpu.memory_space<vmem>>, vector<8x32xf32>
    tpu.vector_store %arg28[%c8, %c0_20], %50 {strides = array<i32>} : memref<64x32xf32, #tpu.memory_space<vmem>>, vector<8x32xf32>,
    %52 = vector.extract_strided_slice %10 {offsets = [16, 0], sizes = [8, 128], strides = [1, 1]} : vector<64x128xf32> to vector<8x128xf32>
    %cst_21 = arith.constant dense<0.000000e+00> : vector<8x128xf32>
    %53 = tpu.matmul %50, %11, %cst_21 {dimension_numbers = #tpu.dot_dimension_numbers<[1], [0], [0], [1], [0, 0, 1, 1], [], []>} : vector<8x32xf32>, vector<32x128xf32>, vector<8x128xf32> -> vector<8x128xf32>
    %54 = arith.addf %52, %53 : vector<8x128xf32>
    %55 = arith.negf %54 : vector<8x128xf32>
    %56 = math.exp %55 : vector<8x128xf32>
    %cst_22 = arith.constant 1.000000e+00 : f32
    %57 = vector.broadcast %cst_22 : f32 to vector<8x128xf32>
    %58 = arith.addf %57, %56 : vector<8x128xf32>
    %59 = arith.divf %57, %58 : vector<8x128xf32>
    %60 = math.tanh %54 : vector<8x128xf32>
    %61 = vector.extract_strided_slice %59 {offsets = [0, 0], sizes = [8, 32], strides = [1, 1]} : vector<8x128xf32> to vector<8x32xf32>
    %62 = vector.extract_strided_slice %59 {offsets = [0, 32], sizes = [8, 32], strides = [1, 1]} : vector<8x128xf32> to vector<8x32xf32>
    %63 = vector.extract_strided_slice %60 {offsets = [0, 64], sizes = [8, 32], strides = [1, 1]} : vector<8x128xf32> to vector<8x32xf32>
    %64 = vector.extract_strided_slice %59 {offsets = [0, 96], sizes = [8, 32], strides = [1, 1]} : vector<8x128xf32> to vector<8x32xf32>
    %65 = arith.mulf %62, %48 : vector<8x32xf32>
    %66 = arith.mulf %61, %63 : vector<8x32xf32>
    %67 = arith.addf %65, %66 : vector<8x32xf32>
    %68 = math.tanh %67 : vector<8x32xf32>
    %69 = arith.mulf %64, %68 : vector<8x32xf32>
    %c16 = arith.constant 16 : index
    %c0_23 = arith.constant 0 : index
    %70 = vector.load %arg28[%c16, %c0_23] : memref<64x32xf32, #tpu.memory_space<vmem>>, vector<8x32xf32>
    tpu.vector_store %arg28[%c16, %c0_23], %69 {strides = array<i32>} : memref<64x32xf32, #tpu.memory_space<vmem>>, vector<8x32xf32>,
    %71 = vector.extract_strided_slice %10 {offsets = [24, 0], sizes = [8, 128], strides = [1, 1]} : vector<64x128xf32> to vector<8x128xf32>
    %cst_24 = arith.constant dense<0.000000e+00> : vector<8x128xf32>
    %72 = tpu.matmul %69, %11, %cst_24 {dimension_numbers = #tpu.dot_dimension_numbers<[1], [0], [0], [1], [0, 0, 1, 1], [], []>} : vector<8x32xf32>, vector<32x128xf32>, vector<8x128xf32> -> vector<8x128xf32>
    %73 = arith.addf %71, %72 : vector<8x128xf32>
    %74 = arith.negf %73 : vector<8x128xf32>
    %75 = math.exp %74 : vector<8x128xf32>
    %cst_25 = arith.constant 1.000000e+00 : f32
    %76 = vector.broadcast %cst_25 : f32 to vector<8x128xf32>
    %77 = arith.addf %76, %75 : vector<8x128xf32>
    %78 = arith.divf %76, %77 : vector<8x128xf32>
    %79 = math.tanh %73 : vector<8x128xf32>
    %80 = vector.extract_strided_slice %78 {offsets = [0, 0], sizes = [8, 32], strides = [1, 1]} : vector<8x128xf32> to vector<8x32xf32>
    %81 = vector.extract_strided_slice %78 {offsets = [0, 32], sizes = [8, 32], strides = [1, 1]} : vector<8x128xf32> to vector<8x32xf32>
    %82 = vector.extract_strided_slice %79 {offsets = [0, 64], sizes = [8, 32], strides = [1, 1]} : vector<8x128xf32> to vector<8x32xf32>
    %83 = vector.extract_strided_slice %78 {offsets = [0, 96], sizes = [8, 32], strides = [1, 1]} : vector<8x128xf32> to vector<8x32xf32>
    %84 = arith.mulf %81, %67 : vector<8x32xf32>
    %85 = arith.mulf %80, %82 : vector<8x32xf32>
    %86 = arith.addf %84, %85 : vector<8x32xf32>
    %87 = math.tanh %86 : vector<8x32xf32>
    %88 = arith.mulf %83, %87 : vector<8x32xf32>
    %c24 = arith.constant 24 : index
    %c0_26 = arith.constant 0 : index
    %89 = vector.load %arg28[%c24, %c0_26] : memref<64x32xf32, #tpu.memory_space<vmem>>, vector<8x32xf32>
    tpu.vector_store %arg28[%c24, %c0_26], %88 {strides = array<i32>} : memref<64x32xf32, #tpu.memory_space<vmem>>, vector<8x32xf32>,
    %90 = vector.extract_strided_slice %10 {offsets = [32, 0], sizes = [8, 128], strides = [1, 1]} : vector<64x128xf32> to vector<8x128xf32>
    %cst_27 = arith.constant dense<0.000000e+00> : vector<8x128xf32>
    %91 = tpu.matmul %88, %11, %cst_27 {dimension_numbers = #tpu.dot_dimension_numbers<[1], [0], [0], [1], [0, 0, 1, 1], [], []>} : vector<8x32xf32>, vector<32x128xf32>, vector<8x128xf32> -> vector<8x128xf32>
    %92 = arith.addf %90, %91 : vector<8x128xf32>
    %93 = arith.negf %92 : vector<8x128xf32>
    %94 = math.exp %93 : vector<8x128xf32>
    %cst_28 = arith.constant 1.000000e+00 : f32
    %95 = vector.broadcast %cst_28 : f32 to vector<8x128xf32>
    %96 = arith.addf %95, %94 : vector<8x128xf32>
    %97 = arith.divf %95, %96 : vector<8x128xf32>
    %98 = math.tanh %92 : vector<8x128xf32>
    %99 = vector.extract_strided_slice %97 {offsets = [0, 0], sizes = [8, 32], strides = [1, 1]} : vector<8x128xf32> to vector<8x32xf32>
    %100 = vector.extract_strided_slice %97 {offsets = [0, 32], sizes = [8, 32], strides = [1, 1]} : vector<8x128xf32> to vector<8x32xf32>
    %101 = vector.extract_strided_slice %98 {offsets = [0, 64], sizes = [8, 32], strides = [1, 1]} : vector<8x128xf32> to vector<8x32xf32>
    %102 = vector.extract_strided_slice %97 {offsets = [0, 96], sizes = [8, 32], strides = [1, 1]} : vector<8x128xf32> to vector<8x32xf32>
    %103 = arith.mulf %100, %86 : vector<8x32xf32>
    %104 = arith.mulf %99, %101 : vector<8x32xf32>
    %105 = arith.addf %103, %104 : vector<8x32xf32>
    %106 = math.tanh %105 : vector<8x32xf32>
    %107 = arith.mulf %102, %106 : vector<8x32xf32>
    %c32 = arith.constant 32 : index
    %c0_29 = arith.constant 0 : index
    %108 = vector.load %arg28[%c32, %c0_29] : memref<64x32xf32, #tpu.memory_space<vmem>>, vector<8x32xf32>
    tpu.vector_store %arg28[%c32, %c0_29], %107 {strides = array<i32>} : memref<64x32xf32, #tpu.memory_space<vmem>>, vector<8x32xf32>,
    %109 = vector.extract_strided_slice %10 {offsets = [40, 0], sizes = [8, 128], strides = [1, 1]} : vector<64x128xf32> to vector<8x128xf32>
    %cst_30 = arith.constant dense<0.000000e+00> : vector<8x128xf32>
    %110 = tpu.matmul %107, %11, %cst_30 {dimension_numbers = #tpu.dot_dimension_numbers<[1], [0], [0], [1], [0, 0, 1, 1], [], []>} : vector<8x32xf32>, vector<32x128xf32>, vector<8x128xf32> -> vector<8x128xf32>
    %111 = arith.addf %109, %110 : vector<8x128xf32>
    %112 = arith.negf %111 : vector<8x128xf32>
    %113 = math.exp %112 : vector<8x128xf32>
    %cst_31 = arith.constant 1.000000e+00 : f32
    %114 = vector.broadcast %cst_31 : f32 to vector<8x128xf32>
    %115 = arith.addf %114, %113 : vector<8x128xf32>
    %116 = arith.divf %114, %115 : vector<8x128xf32>
    %117 = math.tanh %111 : vector<8x128xf32>
    %118 = vector.extract_strided_slice %116 {offsets = [0, 0], sizes = [8, 32], strides = [1, 1]} : vector<8x128xf32> to vector<8x32xf32>
    %119 = vector.extract_strided_slice %116 {offsets = [0, 32], sizes = [8, 32], strides = [1, 1]} : vector<8x128xf32> to vector<8x32xf32>
    %120 = vector.extract_strided_slice %117 {offsets = [0, 64], sizes = [8, 32], strides = [1, 1]} : vector<8x128xf32> to vector<8x32xf32>
    %121 = vector.extract_strided_slice %116 {offsets = [0, 96], sizes = [8, 32], strides = [1, 1]} : vector<8x128xf32> to vector<8x32xf32>
    %122 = arith.mulf %119, %105 : vector<8x32xf32>
    %123 = arith.mulf %118, %120 : vector<8x32xf32>
    %124 = arith.addf %122, %123 : vector<8x32xf32>
    %125 = math.tanh %124 : vector<8x32xf32>
    %126 = arith.mulf %121, %125 : vector<8x32xf32>
    %c40 = arith.constant 40 : index
    %c0_32 = arith.constant 0 : index
    %127 = vector.load %arg28[%c40, %c0_32] : memref<64x32xf32, #tpu.memory_space<vmem>>, vector<8x32xf32>
    tpu.vector_store %arg28[%c40, %c0_32], %126 {strides = array<i32>} : memref<64x32xf32, #tpu.memory_space<vmem>>, vector<8x32xf32>,
    %128 = vector.extract_strided_slice %10 {offsets = [48, 0], sizes = [8, 128], strides = [1, 1]} : vector<64x128xf32> to vector<8x128xf32>
    %cst_33 = arith.constant dense<0.000000e+00> : vector<8x128xf32>
    %129 = tpu.matmul %126, %11, %cst_33 {dimension_numbers = #tpu.dot_dimension_numbers<[1], [0], [0], [1], [0, 0, 1, 1], [], []>} : vector<8x32xf32>, vector<32x128xf32>, vector<8x128xf32> -> vector<8x128xf32>
    %130 = arith.addf %128, %129 : vector<8x128xf32>
    %131 = arith.negf %130 : vector<8x128xf32>
    %132 = math.exp %131 : vector<8x128xf32>
    %cst_34 = arith.constant 1.000000e+00 : f32
    %133 = vector.broadcast %cst_34 : f32 to vector<8x128xf32>
    %134 = arith.addf %133, %132 : vector<8x128xf32>
    %135 = arith.divf %133, %134 : vector<8x128xf32>
    %136 = math.tanh %130 : vector<8x128xf32>
    %137 = vector.extract_strided_slice %135 {offsets = [0, 0], sizes = [8, 32], strides = [1, 1]} : vector<8x128xf32> to vector<8x32xf32>
    %138 = vector.extract_strided_slice %135 {offsets = [0, 32], sizes = [8, 32], strides = [1, 1]} : vector<8x128xf32> to vector<8x32xf32>
    %139 = vector.extract_strided_slice %136 {offsets = [0, 64], sizes = [8, 32], strides = [1, 1]} : vector<8x128xf32> to vector<8x32xf32>
    %140 = vector.extract_strided_slice %135 {offsets = [0, 96], sizes = [8, 32], strides = [1, 1]} : vector<8x128xf32> to vector<8x32xf32>
    %141 = arith.mulf %138, %124 : vector<8x32xf32>
    %142 = arith.mulf %137, %139 : vector<8x32xf32>
    %143 = arith.addf %141, %142 : vector<8x32xf32>
    %144 = math.tanh %143 : vector<8x32xf32>
    %145 = arith.mulf %140, %144 : vector<8x32xf32>
    %c48 = arith.constant 48 : index
    %c0_35 = arith.constant 0 : index
    %146 = vector.load %arg28[%c48, %c0_35] : memref<64x32xf32, #tpu.memory_space<vmem>>, vector<8x32xf32>
    tpu.vector_store %arg28[%c48, %c0_35], %145 {strides = array<i32>} : memref<64x32xf32, #tpu.memory_space<vmem>>, vector<8x32xf32>,
    %147 = vector.extract_strided_slice %10 {offsets = [56, 0], sizes = [8, 128], strides = [1, 1]} : vector<64x128xf32> to vector<8x128xf32>
    %cst_36 = arith.constant dense<0.000000e+00> : vector<8x128xf32>
    %148 = tpu.matmul %145, %11, %cst_36 {dimension_numbers = #tpu.dot_dimension_numbers<[1], [0], [0], [1], [0, 0, 1, 1], [], []>} : vector<8x32xf32>, vector<32x128xf32>, vector<8x128xf32> -> vector<8x128xf32>
    %149 = arith.addf %147, %148 : vector<8x128xf32>
    %150 = arith.negf %149 : vector<8x128xf32>
    %151 = math.exp %150 : vector<8x128xf32>
    %cst_37 = arith.constant 1.000000e+00 : f32
    %152 = vector.broadcast %cst_37 : f32 to vector<8x128xf32>
    %153 = arith.addf %152, %151 : vector<8x128xf32>
    %154 = arith.divf %152, %153 : vector<8x128xf32>
    %155 = math.tanh %149 : vector<8x128xf32>
    %156 = vector.extract_strided_slice %154 {offsets = [0, 0], sizes = [8, 32], strides = [1, 1]} : vector<8x128xf32> to vector<8x32xf32>
    %157 = vector.extract_strided_slice %154 {offsets = [0, 32], sizes = [8, 32], strides = [1, 1]} : vector<8x128xf32> to vector<8x32xf32>
    %158 = vector.extract_strided_slice %155 {offsets = [0, 64], sizes = [8, 32], strides = [1, 1]} : vector<8x128xf32> to vector<8x32xf32>
    %159 = vector.extract_strided_slice %154 {offsets = [0, 96], sizes = [8, 32], strides = [1, 1]} : vector<8x128xf32> to vector<8x32xf32>
    %160 = arith.mulf %157, %143 : vector<8x32xf32>
    %161 = arith.mulf %156, %158 : vector<8x32xf32>
    %162 = arith.addf %160, %161 : vector<8x32xf32>
    %163 = math.tanh %162 : vector<8x32xf32>
    %164 = arith.mulf %159, %163 : vector<8x32xf32>
    %c56 = arith.constant 56 : index
    %c0_38 = arith.constant 0 : index
    %165 = vector.load %arg28[%c56, %c0_38] : memref<64x32xf32, #tpu.memory_space<vmem>>, vector<8x32xf32>
    tpu.vector_store %arg28[%c56, %c0_38], %164 {strides = array<i32>} : memref<64x32xf32, #tpu.memory_space<vmem>>, vector<8x32xf32>,
    %c0_39 = arith.constant 0 : index
    %c0_40 = arith.constant 0 : index
    %166 = vector.load %arg28[%c0_39, %c0_40] : memref<64x32xf32, #tpu.memory_space<vmem>>, vector<64x32xf32>
    %c0_41 = arith.constant 0 : index
    %c0_42 = arith.constant 0 : index
    %167 = vector.load %arg6[%c0_41, %c0_42] : memref<32x32xf32, #tpu.memory_space<vmem>>, vector<32x32xf32>
    %cst_43 = arith.constant dense<0.000000e+00> : vector<64x32xf32>
    %168 = tpu.matmul %166, %167, %cst_43 {dimension_numbers = #tpu.dot_dimension_numbers<[1], [0], [0], [1], [0, 0, 1, 1], [], []>} : vector<64x32xf32>, vector<32x32xf32>, vector<64x32xf32> -> vector<64x32xf32>
    %c0_44 = arith.constant 0 : index
    %c0_45 = arith.constant 0 : index
    %169 = vector.load %arg7[%c0_44, %c0_45] : memref<1x32xf32, #tpu.memory_space<vmem>>, vector<1x32xf32>
    %170 = vector.broadcast %169 : vector<1x32xf32> to vector<64x32xf32>
    %171 = arith.addf %168, %170 : vector<64x32xf32>
    %cst_46 = arith.constant 0.000000e+00 : f32
    %172 = vector.broadcast %cst_46 : f32 to vector<64x32xf32>
    %173 = arith.maximumf %171, %172 : vector<64x32xf32>
    %c0_47 = arith.constant 0 : index
    %c0_48 = arith.constant 0 : index
    %174 = vector.load %arg8[%c0_47, %c0_48] : memref<32x32xf32, #tpu.memory_space<vmem>>, vector<32x32xf32>
    %cst_49 = arith.constant dense<0.000000e+00> : vector<64x32xf32>
    %175 = tpu.matmul %173, %174, %cst_49 {dimension_numbers = #tpu.dot_dimension_numbers<[1], [0], [0], [1], [0, 0, 1, 1], [], []>} : vector<64x32xf32>, vector<32x32xf32>, vector<64x32xf32> -> vector<64x32xf32>
    %c0_50 = arith.constant 0 : index
    %c0_51 = arith.constant 0 : index
    %176 = vector.load %arg9[%c0_50, %c0_51] : memref<1x32xf32, #tpu.memory_space<vmem>>, vector<1x32xf32>
    %177 = vector.broadcast %176 : vector<1x32xf32> to vector<64x32xf32>
    %178 = arith.addf %175, %177 : vector<64x32xf32>
    %c0_52 = arith.constant 0 : index
    %c0_53 = arith.constant 0 : index
    %179 = vector.load %arg13[%c0_52, %c0_53] : memref<1x32xf32, #tpu.memory_space<vmem>>, vector<1x32xf32>
    %cst_54 = arith.constant 9.99999974E-6 : f32
    %180 = vector.broadcast %cst_54 : f32 to vector<1x32xf32>
    %181 = arith.addf %179, %180 : vector<1x32xf32>
    %182 = math.rsqrt %181 : vector<1x32xf32>
    %c0_55 = arith.constant 0 : index
    %c0_56 = arith.constant 0 : index
    %183 = vector.load %arg12[%c0_55, %c0_56] : memref<1x32xf32, #tpu.memory_space<vmem>>, vector<1x32xf32>
    %184 = vector.broadcast %183 : vector<1x32xf32> to vector<64x32xf32>
    %185 = arith.subf %178, %184 : vector<64x32xf32>
    %186 = vector.broadcast %182 : vector<1x32xf32> to vector<64x32xf32>
    %187 = arith.mulf %185, %186 : vector<64x32xf32>
    %c0_57 = arith.constant 0 : index
    %c0_58 = arith.constant 0 : index
    %188 = vector.load %arg10[%c0_57, %c0_58] : memref<1x32xf32, #tpu.memory_space<vmem>>, vector<1x32xf32>
    %189 = vector.broadcast %188 : vector<1x32xf32> to vector<64x32xf32>
    %190 = arith.mulf %187, %189 : vector<64x32xf32>
    %c0_59 = arith.constant 0 : index
    %c0_60 = arith.constant 0 : index
    %191 = vector.load %arg11[%c0_59, %c0_60] : memref<1x32xf32, #tpu.memory_space<vmem>>, vector<1x32xf32>
    %192 = vector.broadcast %191 : vector<1x32xf32> to vector<64x32xf32>
    %193 = arith.addf %190, %192 : vector<64x32xf32>
    %194 = arith.addf %193, %166 : vector<64x32xf32>
    %c0_61 = arith.constant 0 : index
    %c0_62 = arith.constant 0 : index
    %195 = vector.load %arg14[%c0_61, %c0_62] : memref<32x128xf32, #tpu.memory_space<vmem>>, vector<32x128xf32>
    %cst_63 = arith.constant dense<0.000000e+00> : vector<64x128xf32>
    %196 = tpu.matmul %194, %195, %cst_63 {dimension_numbers = #tpu.dot_dimension_numbers<[1], [0], [0], [1], [0, 0, 1, 1], [], []>} : vector<64x32xf32>, vector<32x128xf32>, vector<64x128xf32> -> vector<64x128xf32>
    %c0_64 = arith.constant 0 : index
    %c0_65 = arith.constant 0 : index
    %197 = vector.load %arg16[%c0_64, %c0_65] : memref<1x128xf32, #tpu.memory_space<vmem>>, vector<1x128xf32>
    %198 = vector.broadcast %197 : vector<1x128xf32> to vector<64x128xf32>
    %199 = arith.addf %196, %198 : vector<64x128xf32>
    %c0_66 = arith.constant 0 : index
    %c0_67 = arith.constant 0 : index
    %200 = vector.load %arg15[%c0_66, %c0_67] : memref<32x128xf32, #tpu.memory_space<vmem>>, vector<32x128xf32>
    %cst_68 = arith.constant 0.000000e+00 : f32
    %201 = vector.broadcast %cst_68 : f32 to vector<8x32xf32>
    %cst_69 = arith.constant 0.000000e+00 : f32
    %202 = vector.broadcast %cst_69 : f32 to vector<8x32xf32>
    %203 = vector.extract_strided_slice %199 {offsets = [0, 0], sizes = [8, 128], strides = [1, 1]} : vector<64x128xf32> to vector<8x128xf32>
    %cst_70 = arith.constant dense<0.000000e+00> : vector<8x128xf32>
    %204 = tpu.matmul %201, %200, %cst_70 {dimension_numbers = #tpu.dot_dimension_numbers<[1], [0], [0], [1], [0, 0, 1, 1], [], []>} : vector<8x32xf32>, vector<32x128xf32>, vector<8x128xf32> -> vector<8x128xf32>
    %205 = arith.addf %203, %204 : vector<8x128xf32>
    %206 = arith.negf %205 : vector<8x128xf32>
    %207 = math.exp %206 : vector<8x128xf32>
    %cst_71 = arith.constant 1.000000e+00 : f32
    %208 = vector.broadcast %cst_71 : f32 to vector<8x128xf32>
    %209 = arith.addf %208, %207 : vector<8x128xf32>
    %210 = arith.divf %208, %209 : vector<8x128xf32>
    %211 = math.tanh %205 : vector<8x128xf32>
    %212 = vector.extract_strided_slice %210 {offsets = [0, 0], sizes = [8, 32], strides = [1, 1]} : vector<8x128xf32> to vector<8x32xf32>
    %213 = vector.extract_strided_slice %210 {offsets = [0, 32], sizes = [8, 32], strides = [1, 1]} : vector<8x128xf32> to vector<8x32xf32>
    %214 = vector.extract_strided_slice %211 {offsets = [0, 64], sizes = [8, 32], strides = [1, 1]} : vector<8x128xf32> to vector<8x32xf32>
    %215 = vector.extract_strided_slice %210 {offsets = [0, 96], sizes = [8, 32], strides = [1, 1]} : vector<8x128xf32> to vector<8x32xf32>
    %216 = arith.mulf %213, %202 : vector<8x32xf32>
    %217 = arith.mulf %212, %214 : vector<8x32xf32>
    %218 = arith.addf %216, %217 : vector<8x32xf32>
    %219 = math.tanh %218 : vector<8x32xf32>
    %220 = arith.mulf %215, %219 : vector<8x32xf32>
    %221 = vector.extract_strided_slice %199 {offsets = [8, 0], sizes = [8, 128], strides = [1, 1]} : vector<64x128xf32> to vector<8x128xf32>
    %cst_72 = arith.constant dense<0.000000e+00> : vector<8x128xf32>
    %222 = tpu.matmul %220, %200, %cst_72 {dimension_numbers = #tpu.dot_dimension_numbers<[1], [0], [0], [1], [0, 0, 1, 1], [], []>} : vector<8x32xf32>, vector<32x128xf32>, vector<8x128xf32> -> vector<8x128xf32>
    %223 = arith.addf %221, %222 : vector<8x128xf32>
    %224 = arith.negf %223 : vector<8x128xf32>
    %225 = math.exp %224 : vector<8x128xf32>
    %cst_73 = arith.constant 1.000000e+00 : f32
    %226 = vector.broadcast %cst_73 : f32 to vector<8x128xf32>
    %227 = arith.addf %226, %225 : vector<8x128xf32>
    %228 = arith.divf %226, %227 : vector<8x128xf32>
    %229 = math.tanh %223 : vector<8x128xf32>
    %230 = vector.extract_strided_slice %228 {offsets = [0, 0], sizes = [8, 32], strides = [1, 1]} : vector<8x128xf32> to vector<8x32xf32>
    %231 = vector.extract_strided_slice %228 {offsets = [0, 32], sizes = [8, 32], strides = [1, 1]} : vector<8x128xf32> to vector<8x32xf32>
    %232 = vector.extract_strided_slice %229 {offsets = [0, 64], sizes = [8, 32], strides = [1, 1]} : vector<8x128xf32> to vector<8x32xf32>
    %233 = vector.extract_strided_slice %228 {offsets = [0, 96], sizes = [8, 32], strides = [1, 1]} : vector<8x128xf32> to vector<8x32xf32>
    %234 = arith.mulf %231, %218 : vector<8x32xf32>
    %235 = arith.mulf %230, %232 : vector<8x32xf32>
    %236 = arith.addf %234, %235 : vector<8x32xf32>
    %237 = math.tanh %236 : vector<8x32xf32>
    %238 = arith.mulf %233, %237 : vector<8x32xf32>
    %239 = vector.extract_strided_slice %199 {offsets = [16, 0], sizes = [8, 128], strides = [1, 1]} : vector<64x128xf32> to vector<8x128xf32>
    %cst_74 = arith.constant dense<0.000000e+00> : vector<8x128xf32>
    %240 = tpu.matmul %238, %200, %cst_74 {dimension_numbers = #tpu.dot_dimension_numbers<[1], [0], [0], [1], [0, 0, 1, 1], [], []>} : vector<8x32xf32>, vector<32x128xf32>, vector<8x128xf32> -> vector<8x128xf32>
    %241 = arith.addf %239, %240 : vector<8x128xf32>
    %242 = arith.negf %241 : vector<8x128xf32>
    %243 = math.exp %242 : vector<8x128xf32>
    %cst_75 = arith.constant 1.000000e+00 : f32
    %244 = vector.broadcast %cst_75 : f32 to vector<8x128xf32>
    %245 = arith.addf %244, %243 : vector<8x128xf32>
    %246 = arith.divf %244, %245 : vector<8x128xf32>
    %247 = math.tanh %241 : vector<8x128xf32>
    %248 = vector.extract_strided_slice %246 {offsets = [0, 0], sizes = [8, 32], strides = [1, 1]} : vector<8x128xf32> to vector<8x32xf32>
    %249 = vector.extract_strided_slice %246 {offsets = [0, 32], sizes = [8, 32], strides = [1, 1]} : vector<8x128xf32> to vector<8x32xf32>
    %250 = vector.extract_strided_slice %247 {offsets = [0, 64], sizes = [8, 32], strides = [1, 1]} : vector<8x128xf32> to vector<8x32xf32>
    %251 = vector.extract_strided_slice %246 {offsets = [0, 96], sizes = [8, 32], strides = [1, 1]} : vector<8x128xf32> to vector<8x32xf32>
    %252 = arith.mulf %249, %236 : vector<8x32xf32>
    %253 = arith.mulf %248, %250 : vector<8x32xf32>
    %254 = arith.addf %252, %253 : vector<8x32xf32>
    %255 = math.tanh %254 : vector<8x32xf32>
    %256 = arith.mulf %251, %255 : vector<8x32xf32>
    %257 = vector.extract_strided_slice %199 {offsets = [24, 0], sizes = [8, 128], strides = [1, 1]} : vector<64x128xf32> to vector<8x128xf32>
    %cst_76 = arith.constant dense<0.000000e+00> : vector<8x128xf32>
    %258 = tpu.matmul %256, %200, %cst_76 {dimension_numbers = #tpu.dot_dimension_numbers<[1], [0], [0], [1], [0, 0, 1, 1], [], []>} : vector<8x32xf32>, vector<32x128xf32>, vector<8x128xf32> -> vector<8x128xf32>
    %259 = arith.addf %257, %258 : vector<8x128xf32>
    %260 = arith.negf %259 : vector<8x128xf32>
    %261 = math.exp %260 : vector<8x128xf32>
    %cst_77 = arith.constant 1.000000e+00 : f32
    %262 = vector.broadcast %cst_77 : f32 to vector<8x128xf32>
    %263 = arith.addf %262, %261 : vector<8x128xf32>
    %264 = arith.divf %262, %263 : vector<8x128xf32>
    %265 = math.tanh %259 : vector<8x128xf32>
    %266 = vector.extract_strided_slice %264 {offsets = [0, 0], sizes = [8, 32], strides = [1, 1]} : vector<8x128xf32> to vector<8x32xf32>
    %267 = vector.extract_strided_slice %264 {offsets = [0, 32], sizes = [8, 32], strides = [1, 1]} : vector<8x128xf32> to vector<8x32xf32>
    %268 = vector.extract_strided_slice %265 {offsets = [0, 64], sizes = [8, 32], strides = [1, 1]} : vector<8x128xf32> to vector<8x32xf32>
    %269 = vector.extract_strided_slice %264 {offsets = [0, 96], sizes = [8, 32], strides = [1, 1]} : vector<8x128xf32> to vector<8x32xf32>
    %270 = arith.mulf %267, %254 : vector<8x32xf32>
    %271 = arith.mulf %266, %268 : vector<8x32xf32>
    %272 = arith.addf %270, %271 : vector<8x32xf32>
    %273 = math.tanh %272 : vector<8x32xf32>
    %274 = arith.mulf %269, %273 : vector<8x32xf32>
    %275 = vector.extract_strided_slice %199 {offsets = [32, 0], sizes = [8, 128], strides = [1, 1]} : vector<64x128xf32> to vector<8x128xf32>
    %cst_78 = arith.constant dense<0.000000e+00> : vector<8x128xf32>
    %276 = tpu.matmul %274, %200, %cst_78 {dimension_numbers = #tpu.dot_dimension_numbers<[1], [0], [0], [1], [0, 0, 1, 1], [], []>} : vector<8x32xf32>, vector<32x128xf32>, vector<8x128xf32> -> vector<8x128xf32>
    %277 = arith.addf %275, %276 : vector<8x128xf32>
    %278 = arith.negf %277 : vector<8x128xf32>
    %279 = math.exp %278 : vector<8x128xf32>
    %cst_79 = arith.constant 1.000000e+00 : f32
    %280 = vector.broadcast %cst_79 : f32 to vector<8x128xf32>
    %281 = arith.addf %280, %279 : vector<8x128xf32>
    %282 = arith.divf %280, %281 : vector<8x128xf32>
    %283 = math.tanh %277 : vector<8x128xf32>
    %284 = vector.extract_strided_slice %282 {offsets = [0, 0], sizes = [8, 32], strides = [1, 1]} : vector<8x128xf32> to vector<8x32xf32>
    %285 = vector.extract_strided_slice %282 {offsets = [0, 32], sizes = [8, 32], strides = [1, 1]} : vector<8x128xf32> to vector<8x32xf32>
    %286 = vector.extract_strided_slice %283 {offsets = [0, 64], sizes = [8, 32], strides = [1, 1]} : vector<8x128xf32> to vector<8x32xf32>
    %287 = vector.extract_strided_slice %282 {offsets = [0, 96], sizes = [8, 32], strides = [1, 1]} : vector<8x128xf32> to vector<8x32xf32>
    %288 = arith.mulf %285, %272 : vector<8x32xf32>
    %289 = arith.mulf %284, %286 : vector<8x32xf32>
    %290 = arith.addf %288, %289 : vector<8x32xf32>
    %291 = math.tanh %290 : vector<8x32xf32>
    %292 = arith.mulf %287, %291 : vector<8x32xf32>
    %293 = vector.extract_strided_slice %199 {offsets = [40, 0], sizes = [8, 128], strides = [1, 1]} : vector<64x128xf32> to vector<8x128xf32>
    %cst_80 = arith.constant dense<0.000000e+00> : vector<8x128xf32>
    %294 = tpu.matmul %292, %200, %cst_80 {dimension_numbers = #tpu.dot_dimension_numbers<[1], [0], [0], [1], [0, 0, 1, 1], [], []>} : vector<8x32xf32>, vector<32x128xf32>, vector<8x128xf32> -> vector<8x128xf32>
    %295 = arith.addf %293, %294 : vector<8x128xf32>
    %296 = arith.negf %295 : vector<8x128xf32>
    %297 = math.exp %296 : vector<8x128xf32>
    %cst_81 = arith.constant 1.000000e+00 : f32
    %298 = vector.broadcast %cst_81 : f32 to vector<8x128xf32>
    %299 = arith.addf %298, %297 : vector<8x128xf32>
    %300 = arith.divf %298, %299 : vector<8x128xf32>
    %301 = math.tanh %295 : vector<8x128xf32>
    %302 = vector.extract_strided_slice %300 {offsets = [0, 0], sizes = [8, 32], strides = [1, 1]} : vector<8x128xf32> to vector<8x32xf32>
    %303 = vector.extract_strided_slice %300 {offsets = [0, 32], sizes = [8, 32], strides = [1, 1]} : vector<8x128xf32> to vector<8x32xf32>
    %304 = vector.extract_strided_slice %301 {offsets = [0, 64], sizes = [8, 32], strides = [1, 1]} : vector<8x128xf32> to vector<8x32xf32>
    %305 = vector.extract_strided_slice %300 {offsets = [0, 96], sizes = [8, 32], strides = [1, 1]} : vector<8x128xf32> to vector<8x32xf32>
    %306 = arith.mulf %303, %290 : vector<8x32xf32>
    %307 = arith.mulf %302, %304 : vector<8x32xf32>
    %308 = arith.addf %306, %307 : vector<8x32xf32>
    %309 = math.tanh %308 : vector<8x32xf32>
    %310 = arith.mulf %305, %309 : vector<8x32xf32>
    %311 = vector.extract_strided_slice %199 {offsets = [48, 0], sizes = [8, 128], strides = [1, 1]} : vector<64x128xf32> to vector<8x128xf32>
    %cst_82 = arith.constant dense<0.000000e+00> : vector<8x128xf32>
    %312 = tpu.matmul %310, %200, %cst_82 {dimension_numbers = #tpu.dot_dimension_numbers<[1], [0], [0], [1], [0, 0, 1, 1], [], []>} : vector<8x32xf32>, vector<32x128xf32>, vector<8x128xf32> -> vector<8x128xf32>
    %313 = arith.addf %311, %312 : vector<8x128xf32>
    %314 = arith.negf %313 : vector<8x128xf32>
    %315 = math.exp %314 : vector<8x128xf32>
    %cst_83 = arith.constant 1.000000e+00 : f32
    %316 = vector.broadcast %cst_83 : f32 to vector<8x128xf32>
    %317 = arith.addf %316, %315 : vector<8x128xf32>
    %318 = arith.divf %316, %317 : vector<8x128xf32>
    %319 = math.tanh %313 : vector<8x128xf32>
    %320 = vector.extract_strided_slice %318 {offsets = [0, 0], sizes = [8, 32], strides = [1, 1]} : vector<8x128xf32> to vector<8x32xf32>
    %321 = vector.extract_strided_slice %318 {offsets = [0, 32], sizes = [8, 32], strides = [1, 1]} : vector<8x128xf32> to vector<8x32xf32>
    %322 = vector.extract_strided_slice %319 {offsets = [0, 64], sizes = [8, 32], strides = [1, 1]} : vector<8x128xf32> to vector<8x32xf32>
    %323 = vector.extract_strided_slice %318 {offsets = [0, 96], sizes = [8, 32], strides = [1, 1]} : vector<8x128xf32> to vector<8x32xf32>
    %324 = arith.mulf %321, %308 : vector<8x32xf32>
    %325 = arith.mulf %320, %322 : vector<8x32xf32>
    %326 = arith.addf %324, %325 : vector<8x32xf32>
    %327 = math.tanh %326 : vector<8x32xf32>
    %328 = arith.mulf %323, %327 : vector<8x32xf32>
    %329 = vector.extract_strided_slice %199 {offsets = [56, 0], sizes = [8, 128], strides = [1, 1]} : vector<64x128xf32> to vector<8x128xf32>
    %cst_84 = arith.constant dense<0.000000e+00> : vector<8x128xf32>
    %330 = tpu.matmul %328, %200, %cst_84 {dimension_numbers = #tpu.dot_dimension_numbers<[1], [0], [0], [1], [0, 0, 1, 1], [], []>} : vector<8x32xf32>, vector<32x128xf32>, vector<8x128xf32> -> vector<8x128xf32>
    %331 = arith.addf %329, %330 : vector<8x128xf32>
    %332 = arith.negf %331 : vector<8x128xf32>
    %333 = math.exp %332 : vector<8x128xf32>
    %cst_85 = arith.constant 1.000000e+00 : f32
    %334 = vector.broadcast %cst_85 : f32 to vector<8x128xf32>
    %335 = arith.addf %334, %333 : vector<8x128xf32>
    %336 = arith.divf %334, %335 : vector<8x128xf32>
    %337 = math.tanh %331 : vector<8x128xf32>
    %338 = vector.extract_strided_slice %336 {offsets = [0, 0], sizes = [8, 32], strides = [1, 1]} : vector<8x128xf32> to vector<8x32xf32>
    %339 = vector.extract_strided_slice %336 {offsets = [0, 32], sizes = [8, 32], strides = [1, 1]} : vector<8x128xf32> to vector<8x32xf32>
    %340 = vector.extract_strided_slice %337 {offsets = [0, 64], sizes = [8, 32], strides = [1, 1]} : vector<8x128xf32> to vector<8x32xf32>
    %341 = vector.extract_strided_slice %336 {offsets = [0, 96], sizes = [8, 32], strides = [1, 1]} : vector<8x128xf32> to vector<8x32xf32>
    %342 = arith.mulf %339, %326 : vector<8x32xf32>
    %343 = arith.mulf %338, %340 : vector<8x32xf32>
    %344 = arith.addf %342, %343 : vector<8x32xf32>
    %345 = math.tanh %344 : vector<8x32xf32>
    %346 = arith.mulf %341, %345 : vector<8x32xf32>
    %c0_86 = arith.constant 0 : index
    %c0_87 = arith.constant 0 : index
    %347 = vector.load %arg17[%c0_86, %c0_87] : memref<32x32xf32, #tpu.memory_space<vmem>>, vector<32x32xf32>
    %cst_88 = arith.constant dense<0.000000e+00> : vector<8x32xf32>
    %348 = tpu.matmul %346, %347, %cst_88 {dimension_numbers = #tpu.dot_dimension_numbers<[1], [0], [0], [1], [0, 0, 1, 1], [], []>} : vector<8x32xf32>, vector<32x32xf32>, vector<8x32xf32> -> vector<8x32xf32>
    %c0_89 = arith.constant 0 : index
    %c0_90 = arith.constant 0 : index
    %349 = vector.load %arg18[%c0_89, %c0_90] : memref<1x32xf32, #tpu.memory_space<vmem>>, vector<1x32xf32>
    %350 = vector.broadcast %349 : vector<1x32xf32> to vector<8x32xf32>
    %351 = arith.addf %348, %350 : vector<8x32xf32>
    %cst_91 = arith.constant 0.000000e+00 : f32
    %352 = vector.broadcast %cst_91 : f32 to vector<8x32xf32>
    %353 = arith.maximumf %351, %352 : vector<8x32xf32>
    %c0_92 = arith.constant 0 : index
    %c0_93 = arith.constant 0 : index
    %354 = vector.load %arg19[%c0_92, %c0_93] : memref<32x32xf32, #tpu.memory_space<vmem>>, vector<32x32xf32>
    %cst_94 = arith.constant dense<0.000000e+00> : vector<8x32xf32>
    %355 = tpu.matmul %353, %354, %cst_94 {dimension_numbers = #tpu.dot_dimension_numbers<[1], [0], [0], [1], [0, 0, 1, 1], [], []>} : vector<8x32xf32>, vector<32x32xf32>, vector<8x32xf32> -> vector<8x32xf32>
    %c0_95 = arith.constant 0 : index
    %c0_96 = arith.constant 0 : index
    %356 = vector.load %arg20[%c0_95, %c0_96] : memref<1x32xf32, #tpu.memory_space<vmem>>, vector<1x32xf32>
    %357 = vector.broadcast %356 : vector<1x32xf32> to vector<8x32xf32>
    %358 = arith.addf %355, %357 : vector<8x32xf32>
    %c0_97 = arith.constant 0 : index
    %c0_98 = arith.constant 0 : index
    %359 = vector.load %arg24[%c0_97, %c0_98] : memref<1x32xf32, #tpu.memory_space<vmem>>, vector<1x32xf32>
    %cst_99 = arith.constant 9.99999974E-6 : f32
    %360 = vector.broadcast %cst_99 : f32 to vector<1x32xf32>
    %361 = arith.addf %359, %360 : vector<1x32xf32>
    %362 = math.rsqrt %361 : vector<1x32xf32>
    %c0_100 = arith.constant 0 : index
    %c0_101 = arith.constant 0 : index
    %363 = vector.load %arg23[%c0_100, %c0_101] : memref<1x32xf32, #tpu.memory_space<vmem>>, vector<1x32xf32>
    %364 = vector.broadcast %363 : vector<1x32xf32> to vector<8x32xf32>
    %365 = arith.subf %358, %364 : vector<8x32xf32>
    %366 = vector.broadcast %362 : vector<1x32xf32> to vector<8x32xf32>
    %367 = arith.mulf %365, %366 : vector<8x32xf32>
    %c0_102 = arith.constant 0 : index
    %c0_103 = arith.constant 0 : index
    %368 = vector.load %arg21[%c0_102, %c0_103] : memref<1x32xf32, #tpu.memory_space<vmem>>, vector<1x32xf32>
    %369 = vector.broadcast %368 : vector<1x32xf32> to vector<8x32xf32>
    %370 = arith.mulf %367, %369 : vector<8x32xf32>
    %c0_104 = arith.constant 0 : index
    %c0_105 = arith.constant 0 : index
    %371 = vector.load %arg22[%c0_104, %c0_105] : memref<1x32xf32, #tpu.memory_space<vmem>>, vector<1x32xf32>
    %372 = vector.broadcast %371 : vector<1x32xf32> to vector<8x32xf32>
    %373 = arith.addf %370, %372 : vector<8x32xf32>
    %374 = arith.addf %373, %346 : vector<8x32xf32>
    %c0_106 = arith.constant 0 : index
    %c0_107 = arith.constant 0 : index
    %375 = vector.load %arg25[%c0_106, %c0_107] : memref<1x32xf32, #tpu.memory_space<vmem>>, vector<1x32xf32>
    %376 = vector.broadcast %375 : vector<1x32xf32> to vector<8x32xf32>
    %377 = arith.mulf %374, %376 : vector<8x32xf32>
    %cst_108 = arith.constant dense<0.000000e+00> : vector<8xf32>
    %378 = vector.multi_reduction <add>, %377, %cst_108 [1] : vector<8x32xf32> to vector<8xf32>
    %379 = vector.shape_cast %378 : vector<8xf32> to vector<8x1xf32>
    %c0_109 = arith.constant 0 : index
    %c0_110 = arith.constant 0 : index
    %380 = vector.load %arg26[%c0_109, %c0_110] : memref<1x1xf32, #tpu.memory_space<vmem>>, vector<1x1xf32>
    %381 = vector.broadcast %380 : vector<1x1xf32> to vector<8x1xf32>
    %382 = arith.addf %379, %381 : vector<8x1xf32>
    %c0_111 = arith.constant 0 : index
    %c0_112 = arith.constant 0 : index
    %383 = vector.load %arg27[%c0_111, %c0_112] : memref<8x1xf32, #tpu.memory_space<vmem>>, vector<8x1xf32>
    tpu.vector_store %arg27[%c0_111, %c0_112], %382 {strides = array<i32>} : memref<8x1xf32, #tpu.memory_space<vmem>>, vector<8x1xf32>,
    return
  }
}

</mosaic_0001>

<llo_original>
// kernel: model_forward.1
$region0: #{model_forward.1}
  #allocation0 [shape = 'u32[]', space=smem, size = 0x4, offset = 0x4, fixed_abs, tag = 'smem constant byte address 0x4 - core index']
  #allocation1 [shape = 'u32[72,128]{1,0:T(1,128)}', space=vmem, size = 0x9000, scoped, tag = 'internal scratch']
  #allocation2 [shape = 'f32[64,32]{1,0:T(8,128)}', space=vmem, size = 0x8000, scoped, tag = 'scratch operand']
  #allocation3 [shape = 'f32[1,1]{1,0:T(1,128)S(1)}', space=vmem, size = 0x200, scoped, tag = 'scoped memory for model_forward.1']
  %s0 = inlined_call_operand.vmem [shape: f32[64,8], index: 0, kind: input, shape index: {}]
  %s1 = inlined_call_operand.vmem [shape: f32[8,32], index: 1, kind: input, shape index: {}]
  %s2 = inlined_call_operand.vmem [shape: f32[1,32], index: 2, kind: input, shape index: {}]
  %s3 = inlined_call_operand.vmem [shape: f32[32,128], index: 3, kind: input, shape index: {}]
  %s4 = inlined_call_operand.vmem [shape: f32[32,128], index: 4, kind: input, shape index: {}]
  %s5 = inlined_call_operand.vmem [shape: f32[1,128], index: 5, kind: input, shape index: {}]
  %s6 = inlined_call_operand.vmem [shape: f32[32,32], index: 6, kind: input, shape index: {}]
  %s7 = inlined_call_operand.vmem [shape: f32[1,32], index: 7, kind: input, shape index: {}]
  %s8 = inlined_call_operand.vmem [shape: f32[32,32], index: 8, kind: input, shape index: {}]
  %s9 = inlined_call_operand.vmem [shape: f32[1,32], index: 9, kind: input, shape index: {}]
  %s10 = inlined_call_operand.vmem [shape: f32[1,32], index: 10, kind: input, shape index: {}]
  %s11 = inlined_call_operand.vmem [shape: f32[1,32], index: 11, kind: input, shape index: {}]
  %s12 = inlined_call_operand.vmem [shape: f32[1,32], index: 12, kind: input, shape index: {}]
  %s13 = inlined_call_operand.vmem [shape: f32[1,32], index: 13, kind: input, shape index: {}]
  %s14 = inlined_call_operand.vmem [shape: f32[32,128], index: 14, kind: input, shape index: {}]
  %s15 = inlined_call_operand.vmem [shape: f32[32,128], index: 15, kind: input, shape index: {}]
  %s16 = inlined_call_operand.vmem [shape: f32[1,128], index: 16, kind: input, shape index: {}]
  %s17 = inlined_call_operand.hbm [shape: f32[32,32], index: 17, kind: input, shape index: {}]
  %s18 = inlined_call_operand.vmem [shape: f32[1,32], index: 18, kind: input, shape index: {}]
  %s19 = inlined_call_operand.hbm [shape: f32[32,32], index: 19, kind: input, shape index: {}]
  %s20 = inlined_call_operand.vmem [shape: f32[1,32], index: 20, kind: input, shape index: {}]
  %s21 = inlined_call_operand.vmem [shape: f32[1,32], index: 21, kind: input, shape index: {}]
  %s22 = inlined_call_operand.vmem [shape: f32[1,32], index: 22, kind: input, shape index: {}]
  %s23 = inlined_call_operand.vmem [shape: f32[1,32], index: 23, kind: input, shape index: {}]
  %s24 = inlined_call_operand.vmem [shape: f32[1,32], index: 24, kind: input, shape index: {}]
  %s25 = inlined_call_operand.vmem [shape: f32[1,32], index: 25, kind: input, shape index: {}]
  %s26 = inlined_call_operand.<no memory space> [shape: f32[1,1], index: 26, kind: input, shape index: {}]
  %s27 = inlined_call_operand.vmem [shape: f32[8,1], index: 27, kind: output, shape index: {}]
  %s28 = sld [smem:[#allocation0]]
  $region126: #{model_forward.1} parent=0
    _
  %s30 = ssub.s32 1, %s28
  %s31 = scalar_select 0, %s30, %s28
  %v32 = vstv %s26
  %33 = vst [vmem:[#allocation3] sm:$0x1] %v32
  $region1: #{model_forward.1} parent=0
    #allocation4 [shape = 'u8[16384]{0}', space=vmem, size = 0x4000, scoped, tag = 'input window, operand 17, single buffered']
    #allocation5 [shape = 's32[1]{0}', space=sflag, size = 0x4, scoped, tag = 'scoped memory for model_forward.1']
    #allocation6 [shape = 'u8[16384]{0}', space=vmem, size = 0x4000, scoped, tag = 'input window, operand 19, single buffered']
    #allocation7 [shape = 's32[1]{0}', space=sflag, size = 0x4, scoped, tag = 'scoped memory for model_forward.1']
    %34 = vsyncpa [#allocation5], 0
    %35 = vsyncpa [#allocation7], 0
    // Predicated region
    $region2: #{model_forward.1} parent=1 // pred_check
      _
    $region3: #{model_forward.1} parent=1 // pred_check_branch
      %37 = sbr.rel (0) target = $region5
    $region4: #{model_forward.1} parent=1 // pred_region
      _
    $region5: #{model_forward.1} parent=1 // pred_fallthru
      _
    // Predicated region
    $region6: #{model_forward.1} parent=1 // pred_check
      _
    $region7: #{model_forward.1} parent=1 // pred_check_branch
      %39 = sbr.rel (0) target = $region9
    $region8: #{model_forward.1} parent=1 // pred_region
      _
    $region9: #{model_forward.1} parent=1 // pred_fallthru
      _
    // Predicated region
    $region10: #{model_forward.1} parent=1 // pred_check
      _
    $region11: #{model_forward.1} parent=1 // pred_check_branch
      %41 = sbr.rel (0) target = $region13
    $region12: #{model_forward.1} parent=1 // pred_region
      _
    $region13: #{model_forward.1} parent=1 // pred_fallthru
      _
    // Predicated region
    $region14: #{model_forward.1} parent=1 // pred_check
      _
    $region15: #{model_forward.1} parent=1 // pred_check_branch
      %43 = sbr.rel (0) target = $region17
    $region16: #{model_forward.1} parent=1 // pred_region
      _
    $region17: #{model_forward.1} parent=1 // pred_fallthru
      _
    // Predicated region
    $region18: #{model_forward.1} parent=1 // pred_check
      _
    $region19: #{model_forward.1} parent=1 // pred_check_branch
      %45 = sbr.rel (0) target = $region21
    $region20: #{model_forward.1} parent=1 // pred_region
      _
    $region21: #{model_forward.1} parent=1 // pred_fallthru
      _
    // Predicated region
    $region22: #{model_forward.1} parent=1 // pred_check
      _
    $region23: #{model_forward.1} parent=1 // pred_check_branch
      %47 = sbr.rel (0) target = $region25
    $region24: #{model_forward.1} parent=1 // pred_region
      _
    $region25: #{model_forward.1} parent=1 // pred_fallthru
      _
    // Predicated region
    $region26: #{model_forward.1} parent=1 // pred_check
      _
    $region27: #{model_forward.1} parent=1 // pred_check_branch
      %49 = sbr.rel (0) target = $region29
    $region28: #{model_forward.1} parent=1 // pred_region
      _
    $region29: #{model_forward.1} parent=1 // pred_fallthru
      _
    // Predicated region
    $region30: #{model_forward.1} parent=1 // pred_check
      _
    $region31: #{model_forward.1} parent=1 // pred_check_branch
      %51 = sbr.rel (0) target = $region33
    $region32: #{model_forward.1} parent=1 // pred_region
      _
    $region33: #{model_forward.1} parent=1 // pred_fallthru
      _
    // Predicated region
    $region34: #{model_forward.1} parent=1 // pred_check
      _
    $region35: #{model_forward.1} parent=1 // pred_check_branch
      %53 = sbr.rel (0) target = $region37
    $region36: #{model_forward.1} parent=1 // pred_region
      _
    $region37: #{model_forward.1} parent=1 // pred_fallthru
      _
    // Predicated region
    $region38: #{model_forward.1} parent=1 // pred_check
      _
    $region39: #{model_forward.1} parent=1 // pred_check_branch
      %55 = sbr.rel (0) target = $region41
    $region40: #{model_forward.1} parent=1 // pred_region
      _
    $region41: #{model_forward.1} parent=1 // pred_fallthru
      _
    // Predicated region
    $region42: #{model_forward.1} parent=1 // pred_check
      _
    $region43: #{model_forward.1} parent=1 // pred_check_branch
      %57 = sbr.rel (0) target = $region45
    $region44: #{model_forward.1} parent=1 // pred_region
      _
    $region45: #{model_forward.1} parent=1 // pred_fallthru
      _
    // Predicated region
    $region46: #{model_forward.1} parent=1 // pred_check
      _
    $region47: #{model_forward.1} parent=1 // pred_check_branch
      %59 = sbr.rel (0) target = $region49
    $region48: #{model_forward.1} parent=1 // pred_region
      _
    $region49: #{model_forward.1} parent=1 // pred_fallthru
      _
    // Predicated region
    $region50: #{model_forward.1} parent=1 // pred_check
      _
    $region51: #{model_forward.1} parent=1 // pred_check_branch
      %61 = sbr.rel (0) target = $region53
    $region52: #{model_forward.1} parent=1 // pred_region
      _
    $region53: #{model_forward.1} parent=1 // pred_fallthru
      _
    // Predicated region
    $region54: #{model_forward.1} parent=1 // pred_check
      _
    $region55: #{model_forward.1} parent=1 // pred_check_branch
      %63 = sbr.rel (0) target = $region57
    $region56: #{model_forward.1} parent=1 // pred_region
      _
    $region57: #{model_forward.1} parent=1 // pred_fallthru
      _
    // Predicated region
    $region58: #{model_forward.1} parent=1 // pred_check
      _
    $region59: #{model_forward.1} parent=1 // pred_check_branch
      %65 = sbr.rel (0) target = $region61
    $region60: #{model_forward.1} parent=1 // pred_region
      _
    $region61: #{model_forward.1} parent=1 // pred_fallthru
      _
    // Predicated region
    $region62: #{model_forward.1} parent=1 // pred_check
      _
    $region63: #{model_forward.1} parent=1 // pred_check_branch
      %67 = sbr.rel (0) target = $region65
    $region64: #{model_forward.1} parent=1 // pred_region
      _
    $region65: #{model_forward.1} parent=1 // pred_fallthru
      _
    // Predicated region
    $region66: #{model_forward.1} parent=1 // pred_check
      _
    $region67: #{model_forward.1} parent=1 // pred_check_branch
      %69 = sbr.rel (0) target = $region69
    $region68: #{model_forward.1} parent=1 // pred_region
      _
    $region69: #{model_forward.1} parent=1 // pred_fallthru
      _
    // Predicated region
    $region70: #{model_forward.1} parent=1 // pred_check
      _
    $region71: #{model_forward.1} parent=1 // pred_check_branch
      %71 = sbr.rel (0) target = $region73
    $region72: #{model_forward.1} parent=1 // pred_region
      %73 = vsyncadd [#allocation5], 0
      %s74 = sshll.u32 %s17, 4
      %s75 = int_to_ptr.hbm [resolvable:$true] %s74
      %s76 = sshll.u32 [#allocation4], 4
      %s77 = int_to_ptr.vmem [resolvable:$true] %s76
      %82 = dma.hbm_to_vmem [thread:$0]  %s75, 512, %s77, [#allocation5], 128, 128, 8
    $region73: #{model_forward.1} parent=1 // pred_fallthru
      _
    // Predicated region
    $region74: #{model_forward.1} parent=1 // pred_check
      _
    $region75: #{model_forward.1} parent=1 // pred_check_branch
      %84 = sbr.rel (0) target = $region77
    $region76: #{model_forward.1} parent=1 // pred_region
      _
    $region77: #{model_forward.1} parent=1 // pred_fallthru
      _
    // Predicated region
    $region78: #{model_forward.1} parent=1 // pred_check
      _
    $region79: #{model_forward.1} parent=1 // pred_check_branch
      %86 = sbr.rel (0) target = $region81
    $region80: #{model_forward.1} parent=1 // pred_region
      %88 = vsyncadd [#allocation7], 0
      %s89 = sshll.u32 %s19, 4
      %s90 = int_to_ptr.hbm [resolvable:$true] %s89
      %s91 = sshll.u32 [#allocation6], 4
      %s92 = int_to_ptr.vmem [resolvable:$true] %s91
      %97 = dma.hbm_to_vmem [thread:$0]  %s90, 512, %s92, [#allocation7], 128, 128, 8
    $region81: #{model_forward.1} parent=1 // pred_fallthru
      _
    // Predicated region
    $region82: #{model_forward.1} parent=1 // pred_check
      _
    $region83: #{model_forward.1} parent=1 // pred_check_branch
      %99 = sbr.rel (0) target = $region85
    $region84: #{model_forward.1} parent=1 // pred_region
      _
    $region85: #{model_forward.1} parent=1 // pred_fallthru
      _
    // Predicated region
    $region86: #{model_forward.1} parent=1 // pred_check
      _
    $region87: #{model_forward.1} parent=1 // pred_check_branch
      %101 = sbr.rel (0) target = $region89
    $region88: #{model_forward.1} parent=1 // pred_region
      _
    $region89: #{model_forward.1} parent=1 // pred_fallthru
      _
    // Predicated region
    $region90: #{model_forward.1} parent=1 // pred_check
      _
    $region91: #{model_forward.1} parent=1 // pred_check_branch
      %103 = sbr.rel (0) target = $region93
    $region92: #{model_forward.1} parent=1 // pred_region
      _
    $region93: #{model_forward.1} parent=1 // pred_fallthru
      _
    // Predicated region
    $region94: #{model_forward.1} parent=1 // pred_check
      _
    $region95: #{model_forward.1} parent=1 // pred_check_branch
      %105 = sbr.rel (0) target = $region97
    $region96: #{model_forward.1} parent=1 // pred_region
      _
    $region97: #{model_forward.1} parent=1 // pred_fallthru
      _
    // Predicated region
    $region98: #{model_forward.1} parent=1 // pred_check
      _
    $region99: #{model_forward.1} parent=1 // pred_check_branch
      %107 = sbr.rel (0) target = $region101
    $region100: #{model_forward.1} parent=1 // pred_region
      _
    $region101: #{model_forward.1} parent=1 // pred_fallthru
      _
    // Predicated region
    $region102: #{model_forward.1} parent=1 // pred_check
      _
    $region103: #{model_forward.1} parent=1 // pred_check_branch
      %109 = sbr.rel (0) target = $region105
    $region104: #{model_forward.1} parent=1 // pred_region
      _
    $region105: #{model_forward.1} parent=1 // pred_fallthru
      _
    // Predicated region
    $region106: #{model_forward.1} parent=1 // pred_check
      _
    $region107: #{model_forward.1} parent=1 // pred_check_branch
      %111 = sbr.rel (0) target = $region109
    $region108: #{model_forward.1} parent=1 // pred_region
      _
    $region109: #{model_forward.1} parent=1 // pred_fallthru
      _
    // Predicated region
    $region110: #{model_forward.1} parent=1 // pred_check
      _
    $region111: #{model_forward.1} parent=1 // pred_check_branch
      %113 = sbr.rel (0) target = $region113
    $region112: #{model_forward.1} parent=1 // pred_region
      %115 = dma.done [#allocation5], 512
    $region113: #{model_forward.1} parent=1 // pred_fallthru
      _
    // Predicated region
    $region114: #{model_forward.1} parent=1 // pred_check
      _
    $region115: #{model_forward.1} parent=1 // pred_check_branch
      %117 = sbr.rel (0) target = $region117
    $region116: #{model_forward.1} parent=1 // pred_region
      %119 = dma.done [#allocation7], 512
    $region117: #{model_forward.1} parent=1 // pred_fallthru
      _
    %v120 = vld [vmem:[%s0] sm:$0xff]
    %v121 = vld [vmem:[%s0 + $0x8] sm:$0xff]
    %v122 = vld [vmem:[%s0 + $0x10] sm:$0xff]
    %v123 = vld [vmem:[%s0 + $0x18] sm:$0xff]
    %v124 = vld [vmem:[%s0 + $0x20] sm:$0xff]
    %v125 = vld [vmem:[%s0 + $0x28] sm:$0xff]
    %v126 = vld [vmem:[%s0 + $0x30] sm:$0xff]
    %v127 = vld [vmem:[%s0 + $0x38] sm:$0xff]
    %v128 = vld [vmem:[%s1] sm:$0xff]
    %v129 = vld [vmem:[%s2] sm:$0x1]
    %v131 = vperm.slane %v129, 0
    %vm133 = vcmask 64512
    %v135 = vsel %vm133, %v120, 0
    %v138 = vsel %vm133, %v121, 0
    %v141 = vsel %vm133, %v122, 0
    %v144 = vsel %vm133, %v123, 0
    %v147 = vsel %vm133, %v124, 0
    %v150 = vsel %vm133, %v125, 0
    %v153 = vsel %vm133, %v126, 0
    %v156 = vsel %vm133, %v127, 0
    %158 = vmatpush.msra.mxu0 0.0
    %159 = vmatpush.msra.mxu0 0.0
    %160 = vmatpush.msra.mxu0 0.0
    %161 = vmatpush.msra.mxu0 0.0
    %162 = vmatpush.msra.mxu0 0.0
    %163 = vmatpush.msra.mxu0 0.0
    %164 = vmatpush.msra.mxu0 0.0
    %165 = vmatpush.msra.mxu0 0.0
    %166 = vmatpush.msra.mxu0 0.0
    %167 = vmatpush.msra.mxu0 0.0
    %168 = vmatpush.msra.mxu0 0.0
    %169 = vmatpush.msra.mxu0 0.0
    %170 = vmatpush.msra.mxu0 0.0
    %171 = vmatpush.msra.mxu0 0.0
    %172 = vmatpush.msra.mxu0 0.0
    %173 = vmatpush.msra.mxu0 %v128
    %174 = vmatmul.f32.gmra.mxu0 %v135
    %v175 = vpop.f32.mrf.mxu0
    %v176 = vadd.f32 %v131, %v175
    %177 = vmatmul.f32.gmra.mxu0 %v138
    %v178 = vpop.f32.mrf.mxu0
    %v179 = vadd.f32 %v131, %v178
    %180 = vmatmul.f32.gmra.mxu0 %v141
    %v181 = vpop.f32.mrf.mxu0
    %v182 = vadd.f32 %v131, %v181
    %183 = vmatmul.f32.gmra.mxu0 %v144
    %v184 = vpop.f32.mrf.mxu0
    %v185 = vadd.f32 %v131, %v184
    %186 = vmatmul.f32.gmra.mxu0 %v147
    %v187 = vpop.f32.mrf.mxu0
    %v188 = vadd.f32 %v131, %v187
    %189 = vmatmul.f32.gmra.mxu0 %v150
    %v190 = vpop.f32.mrf.mxu0
    %v191 = vadd.f32 %v131, %v190
    %192 = vmatmul.f32.gmra.mxu0 %v153
    %v193 = vpop.f32.mrf.mxu0
    %v194 = vadd.f32 %v131, %v193
    %195 = vmatmul.f32.gmra.mxu0 %v156
    %v196 = vpop.f32.mrf.mxu0
    %v197 = vadd.f32 %v131, %v196
    %198 = vdwg.mxu0
    %v199 = vld [vmem:[%s3] sm:$0xff]
    %v200 = vld [vmem:[%s3 + $0x8] sm:$0xff]
    %v201 = vld [vmem:[%s3 + $0x10] sm:$0xff]
    %v202 = vld [vmem:[%s3 + $0x18] sm:$0xff]
    %v203 = vld [vmem:[%s5] sm:$0x1]
    %v205 = vperm.slane %v203, 0
    %vm207 = vcmask 261120
    %v209 = vsel %vm207, %v176, 0
    %v212 = vsel %vm207, %v179, 0
    %v215 = vsel %vm207, %v182, 0
    %v218 = vsel %vm207, %v185, 0
    %v221 = vsel %vm207, %v188, 0
    %v224 = vsel %vm207, %v191, 0
    %v227 = vsel %vm207, %v194, 0
    %v230 = vsel %vm207, %v197, 0
    %232 = vmatpush.msra.mxu0 0.0
    %233 = vmatpush.msra.mxu0 0.0
    %234 = vmatpush.msra.mxu0 0.0
    %235 = vmatpush.msra.mxu0 0.0
    %236 = vmatpush.msra.mxu0 0.0
    %237 = vmatpush.msra.mxu0 0.0
    %238 = vmatpush.msra.mxu0 0.0
    %239 = vmatpush.msra.mxu0 0.0
    %240 = vmatpush.msra.mxu0 0.0
    %241 = vmatpush.msra.mxu0 0.0
    %242 = vmatpush.msra.mxu0 0.0
    %243 = vmatpush.msra.mxu0 0.0
    %244 = vmatpush.msra.mxu0 %v202
    %245 = vmatpush.msra.mxu0 %v201
    %246 = vmatpush.msra.mxu0 %v200
    %247 = vmatpush.msra.mxu0 %v199
    %248 = vmatmul.f32.gmra.mxu0 %v209
    %v249 = vpop.f32.mrf.mxu0
    %v250 = vadd.f32 %v205, %v249
    %251 = vmatmul.f32.gmra.mxu0 %v212
    %v252 = vpop.f32.mrf.mxu0
    %v253 = vadd.f32 %v205, %v252
    %254 = vmatmul.f32.gmra.mxu0 %v215
    %v255 = vpop.f32.mrf.mxu0
    %v256 = vadd.f32 %v205, %v255
    %257 = vmatmul.f32.gmra.mxu0 %v218
    %v258 = vpop.f32.mrf.mxu0
    %v259 = vadd.f32 %v205, %v258
    %260 = vmatmul.f32.gmra.mxu0 %v221
    %v261 = vpop.f32.mrf.mxu0
    %v262 = vadd.f32 %v205, %v261
    %263 = vmatmul.f32.gmra.mxu0 %v224
    %v264 = vpop.f32.mrf.mxu0
    %v265 = vadd.f32 %v205, %v264
    %266 = vmatmul.f32.gmra.mxu0 %v227
    %v267 = vpop.f32.mrf.mxu0
    %v268 = vadd.f32 %v205, %v267
    %269 = vmatmul.f32.gmra.mxu0 %v230
    %v270 = vpop.f32.mrf.mxu0
    %v271 = vadd.f32 %v205, %v270
    %272 = vdwg.mxu0
    %v273 = vld [vmem:[%s4] sm:$0xff]
    %v274 = vld [vmem:[%s4 + $0x8] sm:$0xff]
    %v275 = vld [vmem:[%s4 + $0x10] sm:$0xff]
    %v276 = vld [vmem:[%s4 + $0x18] sm:$0xff]
    %v278 = vsel %vm207, 0.0, 0
    %280 = vmatpush.msra.mxu0 0.0
    %281 = vmatpush.msra.mxu0 0.0
    %282 = vmatpush.msra.mxu0 0.0
    %283 = vmatpush.msra.mxu0 0.0
    %284 = vmatpush.msra.mxu0 0.0
    %285 = vmatpush.msra.mxu0 0.0
    %286 = vmatpush.msra.mxu0 0.0
    %287 = vmatpush.msra.mxu0 0.0
    %288 = vmatpush.msra.mxu0 0.0
    %289 = vmatpush.msra.mxu0 0.0
    %290 = vmatpush.msra.mxu0 0.0
    %291 = vmatpush.msra.mxu0 0.0
    %292 = vmatpush.msra.mxu0 %v276
    %293 = vmatpush.msra.mxu0 %v275
    %294 = vmatpush.msra.mxu0 %v274
    %295 = vmatpush.msra.mxu0 %v273
    %296 = vmatmul.f32.gmra.mxu0 %v278
    %v297 = vpop.f32.mrf.mxu0
    %v298 = vadd.f32 0.0, %v297
    %299 = vdwg.mxu0
    %v300 = vadd.f32 %v250, %v298
    %v301 = vxor.u32 %v300, 2147483648
    %v302 = vmul.f32 %v301, 1.442695
    %v303 = vpow.pop %v302
    %v304 = vadd.f32 %v303, 1.0
    %v305 = vrcp.pop %v304
    %v306 = vmul.f32 %v304, %v305
    %v307 = vsub.f32 1.0, %v306
    %v308 = vmul.f32 %v305, %v307
    %v309 = vadd.f32 %v305, %v308
    %vm310 = vweird.f32 %v304
    %vm311 = vweird.f32 %v305
    %vm312 = vmor %vm310, %vm311
    %v313 = vsel %vm312, %v305, %v309
    %v314 = vand.u32 2147483647, %v304
    %vm315 = vcmp.eq.f32.partialorder %v314, 8.507059e+37
    %v316 = vand.u32 %v304, 2147483648
    %v317 = vor.u32 1.1754944e-38, %v316
    %v318 = vsel %vm315, %v317, %v313
    %v319 = vmul.f32 1.0, %v318
    %v320 = vtanh.pop %v300
    %v321 = vmul.f32 %v319, 0.0
    %323 = vrot.lane.b32.xlu0 %v320, 64
    %v324 = vpop.permute.xlu0 %323
    %v326 = vmul.f32 %v319, %v324
    %328 = vrot.lane.b32.xlu0 %v326, 32
    %v329 = vpop.permute.xlu0 %328
    %v331 = vadd.f32 %v321, %v329
    %v332 = vtanh.pop %v331
    %334 = vrot.lane.b32.xlu0 %v332, 64
    %v335 = vpop.permute.xlu0 %334
    %v337 = vmul.f32 %v319, %v335
    %339 = vrot.lane.b32.xlu0 %v337, 32
    %v340 = vpop.permute.xlu0 %339
    %342 = vst.msk [vmem:[#allocation2] sm:$0xff] %vm207, %v340
    %v343 = vsel %vm207, %v340, 0
    %345 = vmatpush.msra.mxu0 0.0
    %346 = vmatpush.msra.mxu0 0.0
    %347 = vmatpush.msra.mxu0 0.0
    %348 = vmatpush.msra.mxu0 0.0
    %349 = vmatpush.msra.mxu0 0.0
    %350 = vmatpush.msra.mxu0 0.0
    %351 = vmatpush.msra.mxu0 0.0
    %352 = vmatpush.msra.mxu0 0.0
    %353 = vmatpush.msra.mxu0 0.0
    %354 = vmatpush.msra.mxu0 0.0
    %355 = vmatpush.msra.mxu0 0.0
    %356 = vmatpush.msra.mxu0 0.0
    %357 = vmatpush.msra.mxu0 %v276
    %358 = vmatpush.msra.mxu0 %v275
    %359 = vmatpush.msra.mxu0 %v274
    %360 = vmatpush.msra.mxu0 %v273
    %361 = vmatmul.f32.gmra.mxu0 %v343
    %v362 = vpop.f32.mrf.mxu0
    %v363 = vadd.f32 0.0, %v362
    %364 = vdwg.mxu0
    %v365 = vadd.f32 %v253, %v363
    %v366 = vxor.u32 %v365, 2147483648
    %v367 = vmul.f32 %v366, 1.442695
    %v368 = vpow.pop %v367
    %v369 = vadd.f32 %v368, 1.0
    %v370 = vrcp.pop %v369
    %v371 = vmul.f32 %v369, %v370
    %v372 = vsub.f32 1.0, %v371
    %v373 = vmul.f32 %v370, %v372
    %v374 = vadd.f32 %v370, %v373
    %vm375 = vweird.f32 %v369
    %vm376 = vweird.f32 %v370
    %vm377 = vmor %vm375, %vm376
    %v378 = vsel %vm377, %v370, %v374
    %v379 = vand.u32 2147483647, %v369
    %vm380 = vcmp.eq.f32.partialorder %v379, 8.507059e+37
    %v381 = vand.u32 %v369, 2147483648
    %v382 = vor.u32 1.1754944e-38, %v381
    %v383 = vsel %vm380, %v382, %v378
    %v384 = vmul.f32 1.0, %v383
    %v385 = vtanh.pop %v365
    %v386 = vmul.f32 %v384, %v331
    %388 = vrot.lane.b32.xlu0 %v385, 64
    %v389 = vpop.permute.xlu0 %388
    %v391 = vmul.f32 %v384, %v389
    %393 = vrot.lane.b32.xlu0 %v391, 32
    %v394 = vpop.permute.xlu0 %393
    %v396 = vadd.f32 %v386, %v394
    %v397 = vtanh.pop %v396
    %399 = vrot.lane.b32.xlu0 %v397, 64
    %v400 = vpop.permute.xlu0 %399
    %v402 = vmul.f32 %v384, %v400
    %404 = vrot.lane.b32.xlu0 %v402, 32
    %v405 = vpop.permute.xlu0 %404
    %407 = vst.msk [vmem:[#allocation2 + $0x8] sm:$0xff] %vm207, %v405
    %v408 = vsel %vm207, %v405, 0
    %410 = vmatpush.msra.mxu0 0.0
    %411 = vmatpush.msra.mxu0 0.0
    %412 = vmatpush.msra.mxu0 0.0
    %413 = vmatpush.msra.mxu0 0.0
    %414 = vmatpush.msra.mxu0 0.0
    %415 = vmatpush.msra.mxu0 0.0
    %416 = vmatpush.msra.mxu0 0.0
    %417 = vmatpush.msra.mxu0 0.0
    %418 = vmatpush.msra.mxu0 0.0
    %419 = vmatpush.msra.mxu0 0.0
    %420 = vmatpush.msra.mxu0 0.0
    %421 = vmatpush.msra.mxu0 0.0
    %422 = vmatpush.msra.mxu0 %v276
    %423 = vmatpush.msra.mxu0 %v275
    %424 = vmatpush.msra.mxu0 %v274
    %425 = vmatpush.msra.mxu0 %v273
    %426 = vmatmul.f32.gmra.mxu0 %v408
    %v427 = vpop.f32.mrf.mxu0
    %v428 = vadd.f32 0.0, %v427
    %429 = vdwg.mxu0
    %v430 = vadd.f32 %v256, %v428
    %v431 = vxor.u32 %v430, 2147483648
    %v432 = vmul.f32 %v431, 1.442695
    %v433 = vpow.pop %v432
    %v434 = vadd.f32 %v433, 1.0
    %v435 = vrcp.pop %v434
    %v436 = vmul.f32 %v434, %v435
    %v437 = vsub.f32 1.0, %v436
    %v438 = vmul.f32 %v435, %v437
    %v439 = vadd.f32 %v435, %v438
    %vm440 = vweird.f32 %v434
    %vm441 = vweird.f32 %v435
    %vm442 = vmor %vm440, %vm441
    %v443 = vsel %vm442, %v435, %v439
    %v444 = vand.u32 2147483647, %v434
    %vm445 = vcmp.eq.f32.partialorder %v444, 8.507059e+37
    %v446 = vand.u32 %v434, 2147483648
    %v447 = vor.u32 1.1754944e-38, %v446
    %v448 = vsel %vm445, %v447, %v443
    %v449 = vmul.f32 1.0, %v448
    %v450 = vtanh.pop %v430
    %v451 = vmul.f32 %v449, %v396
    %453 = vrot.lane.b32.xlu0 %v450, 64
    %v454 = vpop.permute.xlu0 %453
    %v456 = vmul.f32 %v449, %v454
    %458 = vrot.lane.b32.xlu0 %v456, 32
    %v459 = vpop.permute.xlu0 %458
    %v461 = vadd.f32 %v451, %v459
    %v462 = vtanh.pop %v461
    %464 = vrot.lane.b32.xlu0 %v462, 64
    %v465 = vpop.permute.xlu0 %464
    %v467 = vmul.f32 %v449, %v465
    %469 = vrot.lane.b32.xlu0 %v467, 32
    %v470 = vpop.permute.xlu0 %469
    %472 = vst.msk [vmem:[#allocation2 + $0x10] sm:$0xff] %vm207, %v470
    %v473 = vsel %vm207, %v470, 0
    %475 = vmatpush.msra.mxu0 0.0
    %476 = vmatpush.msra.mxu0 0.0
    %477 = vmatpush.msra.mxu0 0.0
    %478 = vmatpush.msra.mxu0 0.0
    %479 = vmatpush.msra.mxu0 0.0
    %480 = vmatpush.msra.mxu0 0.0
    %481 = vmatpush.msra.mxu0 0.0
    %482 = vmatpush.msra.mxu0 0.0
    %483 = vmatpush.msra.mxu0 0.0
    %484 = vmatpush.msra.mxu0 0.0
    %485 = vmatpush.msra.mxu0 0.0
    %486 = vmatpush.msra.mxu0 0.0
    %487 = vmatpush.msra.mxu0 %v276
    %488 = vmatpush.msra.mxu0 %v275
    %489 = vmatpush.msra.mxu0 %v274
    %490 = vmatpush.msra.mxu0 %v273
    %491 = vmatmul.f32.gmra.mxu0 %v473
    %v492 = vpop.f32.mrf.mxu0
    %v493 = vadd.f32 0.0, %v492
    %494 = vdwg.mxu0
    %v495 = vadd.f32 %v259, %v493
    %v496 = vxor.u32 %v495, 2147483648
    %v497 = vmul.f32 %v496, 1.442695
    %v498 = vpow.pop %v497
    %v499 = vadd.f32 %v498, 1.0
    %v500 = vrcp.pop %v499
    %v501 = vmul.f32 %v499, %v500
    %v502 = vsub.f32 1.0, %v501
    %v503 = vmul.f32 %v500, %v502
    %v504 = vadd.f32 %v500, %v503
    %vm505 = vweird.f32 %v499
    %vm506 = vweird.f32 %v500
    %vm507 = vmor %vm505, %vm506
    %v508 = vsel %vm507, %v500, %v504
    %v509 = vand.u32 2147483647, %v499
    %vm510 = vcmp.eq.f32.partialorder %v509, 8.507059e+37
    %v511 = vand.u32 %v499, 2147483648
    %v512 = vor.u32 1.1754944e-38, %v511
    %v513 = vsel %vm510, %v512, %v508
    %v514 = vmul.f32 1.0, %v513
    %v515 = vtanh.pop %v495
    %v516 = vmul.f32 %v514, %v461
    %518 = vrot.lane.b32.xlu0 %v515, 64
    %v519 = vpop.permute.xlu0 %518
    %v521 = vmul.f32 %v514, %v519
    %523 = vrot.lane.b32.xlu0 %v521, 32
    %v524 = vpop.permute.xlu0 %523
    %v526 = vadd.f32 %v516, %v524
    %v527 = vtanh.pop %v526
    %529 = vrot.lane.b32.xlu0 %v527, 64
    %v530 = vpop.permute.xlu0 %529
    %v532 = vmul.f32 %v514, %v530
    %534 = vrot.lane.b32.xlu0 %v532, 32
    %v535 = vpop.permute.xlu0 %534
    %537 = vst.msk [vmem:[#allocation2 + $0x18] sm:$0xff] %vm207, %v535
    %v538 = vsel %vm207, %v535, 0
    %540 = vmatpush.msra.mxu0 0.0
    %541 = vmatpush.msra.mxu0 0.0
    %542 = vmatpush.msra.mxu0 0.0
    %543 = vmatpush.msra.mxu0 0.0
    %544 = vmatpush.msra.mxu0 0.0
    %545 = vmatpush.msra.mxu0 0.0
    %546 = vmatpush.msra.mxu0 0.0
    %547 = vmatpush.msra.mxu0 0.0
    %548 = vmatpush.msra.mxu0 0.0
    %549 = vmatpush.msra.mxu0 0.0
    %550 = vmatpush.msra.mxu0 0.0
    %551 = vmatpush.msra.mxu0 0.0
    %552 = vmatpush.msra.mxu0 %v276
    %553 = vmatpush.msra.mxu0 %v275
    %554 = vmatpush.msra.mxu0 %v274
    %555 = vmatpush.msra.mxu0 %v273
    %556 = vmatmul.f32.gmra.mxu0 %v538
    %v557 = vpop.f32.mrf.mxu0
    %v558 = vadd.f32 0.0, %v557
    %559 = vdwg.mxu0
    %v560 = vadd.f32 %v262, %v558
    %v561 = vxor.u32 %v560, 2147483648
    %v562 = vmul.f32 %v561, 1.442695
    %v563 = vpow.pop %v562
    %v564 = vadd.f32 %v563, 1.0
    %v565 = vrcp.pop %v564
    %v566 = vmul.f32 %v564, %v565
    %v567 = vsub.f32 1.0, %v566
    %v568 = vmul.f32 %v565, %v567
    %v569 = vadd.f32 %v565, %v568
    %vm570 = vweird.f32 %v564
    %vm571 = vweird.f32 %v565
    %vm572 = vmor %vm570, %vm571
    %v573 = vsel %vm572, %v565, %v569
    %v574 = vand.u32 2147483647, %v564
    %vm575 = vcmp.eq.f32.partialorder %v574, 8.507059e+37
    %v576 = vand.u32 %v564, 2147483648
    %v577 = vor.u32 1.1754944e-38, %v576
    %v578 = vsel %vm575, %v577, %v573
    %v579 = vmul.f32 1.0, %v578
    %v580 = vtanh.pop %v560
    %v581 = vmul.f32 %v579, %v526
    %583 = vrot.lane.b32.xlu0 %v580, 64
    %v584 = vpop.permute.xlu0 %583
    %v586 = vmul.f32 %v579, %v584
    %588 = vrot.lane.b32.xlu0 %v586, 32
    %v589 = vpop.permute.xlu0 %588
    %v591 = vadd.f32 %v581, %v589
    %v592 = vtanh.pop %v591
    %594 = vrot.lane.b32.xlu0 %v592, 64
    %v595 = vpop.permute.xlu0 %594
    %v597 = vmul.f32 %v579, %v595
    %599 = vrot.lane.b32.xlu0 %v597, 32
    %v600 = vpop.permute.xlu0 %599
    %602 = vst.msk [vmem:[#allocation2 + $0x20] sm:$0xff] %vm207, %v600
    %v603 = vsel %vm207, %v600, 0
    %605 = vmatpush.msra.mxu0 0.0
    %606 = vmatpush.msra.mxu0 0.0
    %607 = vmatpush.msra.mxu0 0.0
    %608 = vmatpush.msra.mxu0 0.0
    %609 = vmatpush.msra.mxu0 0.0
    %610 = vmatpush.msra.mxu0 0.0
    %611 = vmatpush.msra.mxu0 0.0
    %612 = vmatpush.msra.mxu0 0.0
    %613 = vmatpush.msra.mxu0 0.0
    %614 = vmatpush.msra.mxu0 0.0
    %615 = vmatpush.msra.mxu0 0.0
    %616 = vmatpush.msra.mxu0 0.0
    %617 = vmatpush.msra.mxu0 %v276
    %618 = vmatpush.msra.mxu0 %v275
    %619 = vmatpush.msra.mxu0 %v274
    %620 = vmatpush.msra.mxu0 %v273
    %621 = vmatmul.f32.gmra.mxu0 %v603
    %v622 = vpop.f32.mrf.mxu0
    %v623 = vadd.f32 0.0, %v622
    %624 = vdwg.mxu0
    %v625 = vadd.f32 %v265, %v623
    %v626 = vxor.u32 %v625, 2147483648
    %v627 = vmul.f32 %v626, 1.442695
    %v628 = vpow.pop %v627
    %v629 = vadd.f32 %v628, 1.0
    %v630 = vrcp.pop %v629
    %v631 = vmul.f32 %v629, %v630
    %v632 = vsub.f32 1.0, %v631
    %v633 = vmul.f32 %v630, %v632
    %v634 = vadd.f32 %v630, %v633
    %vm635 = vweird.f32 %v629
    %vm636 = vweird.f32 %v630
    %vm637 = vmor %vm635, %vm636
    %v638 = vsel %vm637, %v630, %v634
    %v639 = vand.u32 2147483647, %v629
    %vm640 = vcmp.eq.f32.partialorder %v639, 8.507059e+37
    %v641 = vand.u32 %v629, 2147483648
    %v642 = vor.u32 1.1754944e-38, %v641
    %v643 = vsel %vm640, %v642, %v638
    %v644 = vmul.f32 1.0, %v643
    %v645 = vtanh.pop %v625
    %v646 = vmul.f32 %v644, %v591
    %648 = vrot.lane.b32.xlu0 %v645, 64
    %v649 = vpop.permute.xlu0 %648
    %v651 = vmul.f32 %v644, %v649
    %653 = vrot.lane.b32.xlu0 %v651, 32
    %v654 = vpop.permute.xlu0 %653
    %v656 = vadd.f32 %v646, %v654
    %v657 = vtanh.pop %v656
    %659 = vrot.lane.b32.xlu0 %v657, 64
    %v660 = vpop.permute.xlu0 %659
    %v662 = vmul.f32 %v644, %v660
    %664 = vrot.lane.b32.xlu0 %v662, 32
    %v665 = vpop.permute.xlu0 %664
    %667 = vst.msk [vmem:[#allocation2 + $0x28] sm:$0xff] %vm207, %v665
    %v668 = vsel %vm207, %v665, 0
    %670 = vmatpush.msra.mxu0 0.0
    %671 = vmatpush.msra.mxu0 0.0
    %672 = vmatpush.msra.mxu0 0.0
    %673 = vmatpush.msra.mxu0 0.0
    %674 = vmatpush.msra.mxu0 0.0
    %675 = vmatpush.msra.mxu0 0.0
    %676 = vmatpush.msra.mxu0 0.0
    %677 = vmatpush.msra.mxu0 0.0
    %678 = vmatpush.msra.mxu0 0.0
    %679 = vmatpush.msra.mxu0 0.0
    %680 = vmatpush.msra.mxu0 0.0
    %681 = vmatpush.msra.mxu0 0.0
    %682 = vmatpush.msra.mxu0 %v276
    %683 = vmatpush.msra.mxu0 %v275
    %684 = vmatpush.msra.mxu0 %v274
    %685 = vmatpush.msra.mxu0 %v273
    %686 = vmatmul.f32.gmra.mxu0 %v668
    %v687 = vpop.f32.mrf.mxu0
    %v688 = vadd.f32 0.0, %v687
    %689 = vdwg.mxu0
    %v690 = vadd.f32 %v268, %v688
    %v691 = vxor.u32 %v690, 2147483648
    %v692 = vmul.f32 %v691, 1.442695
    %v693 = vpow.pop %v692
    %v694 = vadd.f32 %v693, 1.0
    %v695 = vrcp.pop %v694
    %v696 = vmul.f32 %v694, %v695
    %v697 = vsub.f32 1.0, %v696
    %v698 = vmul.f32 %v695, %v697
    %v699 = vadd.f32 %v695, %v698
    %vm700 = vweird.f32 %v694
    %vm701 = vweird.f32 %v695
    %vm702 = vmor %vm700, %vm701
    %v703 = vsel %vm702, %v695, %v699
    %v704 = vand.u32 2147483647, %v694
    %vm705 = vcmp.eq.f32.partialorder %v704, 8.507059e+37
    %v706 = vand.u32 %v694, 2147483648
    %v707 = vor.u32 1.1754944e-38, %v706
    %v708 = vsel %vm705, %v707, %v703
    %v709 = vmul.f32 1.0, %v708
    %v710 = vtanh.pop %v690
    %v711 = vmul.f32 %v709, %v656
    %713 = vrot.lane.b32.xlu0 %v710, 64
    %v714 = vpop.permute.xlu0 %713
    %v716 = vmul.f32 %v709, %v714
    %718 = vrot.lane.b32.xlu0 %v716, 32
    %v719 = vpop.permute.xlu0 %718
    %v721 = vadd.f32 %v711, %v719
    %v722 = vtanh.pop %v721
    %724 = vrot.lane.b32.xlu0 %v722, 64
    %v725 = vpop.permute.xlu0 %724
    %v727 = vmul.f32 %v709, %v725
    %729 = vrot.lane.b32.xlu0 %v727, 32
    %v730 = vpop.permute.xlu0 %729
    %732 = vst.msk [vmem:[#allocation2 + $0x30] sm:$0xff] %vm207, %v730
    %v733 = vsel %vm207, %v730, 0
    %735 = vmatpush.msra.mxu0 0.0
    %736 = vmatpush.msra.mxu0 0.0
    %737 = vmatpush.msra.mxu0 0.0
    %738 = vmatpush.msra.mxu0 0.0
    %739 = vmatpush.msra.mxu0 0.0
    %740 = vmatpush.msra.mxu0 0.0
    %741 = vmatpush.msra.mxu0 0.0
    %742 = vmatpush.msra.mxu0 0.0
    %743 = vmatpush.msra.mxu0 0.0
    %744 = vmatpush.msra.mxu0 0.0
    %745 = vmatpush.msra.mxu0 0.0
    %746 = vmatpush.msra.mxu0 0.0
    %747 = vmatpush.msra.mxu0 %v276
    %748 = vmatpush.msra.mxu0 %v275
    %749 = vmatpush.msra.mxu0 %v274
    %750 = vmatpush.msra.mxu0 %v273
    %751 = vmatmul.f32.gmra.mxu0 %v733
    %v752 = vpop.f32.mrf.mxu0
    %v753 = vadd.f32 0.0, %v752
    %754 = vdwg.mxu0
    %v755 = vadd.f32 %v271, %v753
    %v756 = vxor.u32 %v755, 2147483648
    %v757 = vmul.f32 %v756, 1.442695
    %v758 = vpow.pop %v757
    %v759 = vadd.f32 %v758, 1.0
    %v760 = vrcp.pop %v759
    %v761 = vmul.f32 %v759, %v760
    %v762 = vsub.f32 1.0, %v761
    %v763 = vmul.f32 %v760, %v762
    %v764 = vadd.f32 %v760, %v763
    %vm765 = vweird.f32 %v759
    %vm766 = vweird.f32 %v760
    %vm767 = vmor %vm765, %vm766
    %v768 = vsel %vm767, %v760, %v764
    %v769 = vand.u32 2147483647, %v759
    %vm770 = vcmp.eq.f32.partialorder %v769, 8.507059e+37
    %v771 = vand.u32 %v759, 2147483648
    %v772 = vor.u32 1.1754944e-38, %v771
    %v773 = vsel %vm770, %v772, %v768
    %v774 = vmul.f32 1.0, %v773
    %v775 = vtanh.pop %v755
    %v776 = vmul.f32 %v774, %v721
    %778 = vrot.lane.b32.xlu0 %v775, 64
    %v779 = vpop.permute.xlu0 %778
    %v781 = vmul.f32 %v774, %v779
    %783 = vrot.lane.b32.xlu0 %v781, 32
    %v784 = vpop.permute.xlu0 %783
    %v786 = vadd.f32 %v776, %v784
    %v787 = vtanh.pop %v786
    %789 = vrot.lane.b32.xlu0 %v787, 64
    %v790 = vpop.permute.xlu0 %789
    %v792 = vmul.f32 %v774, %v790
    %794 = vrot.lane.b32.xlu0 %v792, 32
    %v795 = vpop.permute.xlu0 %794
    %797 = vst.msk [vmem:[#allocation2 + $0x38] sm:$0xff] %vm207, %v795
    %v798 = vld [vmem:[#allocation2] sm:$0xff]
    %v799 = vld [vmem:[#allocation2 + $0x8] sm:$0xff]
    %v800 = vld [vmem:[#allocation2 + $0x10] sm:$0xff]
    %v801 = vld [vmem:[#allocation2 + $0x18] sm:$0xff]
    %v802 = vld [vmem:[#allocation2 + $0x20] sm:$0xff]
    %v803 = vld [vmem:[#allocation2 + $0x28] sm:$0xff]
    %v804 = vld [vmem:[#allocation2 + $0x30] sm:$0xff]
    %v805 = vld [vmem:[#allocation2 + $0x38] sm:$0xff]
    %v806 = vld [vmem:[%s6] sm:$0xff]
    %v807 = vld [vmem:[%s6 + $0x8] sm:$0xff]
    %v808 = vld [vmem:[%s6 + $0x10] sm:$0xff]
    %v809 = vld [vmem:[%s6 + $0x18] sm:$0xff]
    %v810 = vld [vmem:[%s7] sm:$0x1]
    %v812 = vperm.slane %v810, 0
    %v815 = vsel %vm207, %v798, 0
    %v818 = vsel %vm207, %v799, 0
    %v821 = vsel %vm207, %v800, 0
    %v824 = vsel %vm207, %v801, 0
    %v827 = vsel %vm207, %v802, 0
    %v830 = vsel %vm207, %v803, 0
    %v833 = vsel %vm207, %v804, 0
    %v836 = vsel %vm207, %v805, 0
    %838 = vmatpush.msra.mxu0 0.0
    %839 = vmatpush.msra.mxu0 0.0
    %840 = vmatpush.msra.mxu0 0.0
    %841 = vmatpush.msra.mxu0 0.0
    %842 = vmatpush.msra.mxu0 0.0
    %843 = vmatpush.msra.mxu0 0.0
    %844 = vmatpush.msra.mxu0 0.0
    %845 = vmatpush.msra.mxu0 0.0
    %846 = vmatpush.msra.mxu0 0.0
    %847 = vmatpush.msra.mxu0 0.0
    %848 = vmatpush.msra.mxu0 0.0
    %849 = vmatpush.msra.mxu0 0.0
    %850 = vmatpush.msra.mxu0 %v809
    %851 = vmatpush.msra.mxu0 %v808
    %852 = vmatpush.msra.mxu0 %v807
    %853 = vmatpush.msra.mxu0 %v806
    %854 = vmatmul.f32.gmra.mxu0 %v815
    %v855 = vpop.f32.mrf.mxu0
    %v856 = vadd.f32 %v812, %v855
    %857 = vmatmul.f32.gmra.mxu0 %v818
    %v858 = vpop.f32.mrf.mxu0
    %v859 = vadd.f32 %v812, %v858
    %860 = vmatmul.f32.gmra.mxu0 %v821
    %v861 = vpop.f32.mrf.mxu0
    %v862 = vadd.f32 %v812, %v861
    %863 = vmatmul.f32.gmra.mxu0 %v824
    %v864 = vpop.f32.mrf.mxu0
    %v865 = vadd.f32 %v812, %v864
    %866 = vmatmul.f32.gmra.mxu0 %v827
    %v867 = vpop.f32.mrf.mxu0
    %v868 = vadd.f32 %v812, %v867
    %869 = vmatmul.f32.gmra.mxu0 %v830
    %v870 = vpop.f32.mrf.mxu0
    %v871 = vadd.f32 %v812, %v870
    %872 = vmatmul.f32.gmra.mxu0 %v833
    %v873 = vpop.f32.mrf.mxu0
    %v874 = vadd.f32 %v812, %v873
    %875 = vmatmul.f32.gmra.mxu0 %v836
    %v876 = vpop.f32.mrf.mxu0
    %v877 = vadd.f32 %v812, %v876
    %878 = vdwg.mxu0
    %v879 = vmax.f32 %v856, 0.0
    %v880 = vmax.f32 %v859, 0.0
    %v881 = vmax.f32 %v862, 0.0
    %v882 = vmax.f32 %v865, 0.0
    %v883 = vmax.f32 %v868, 0.0
    %v884 = vmax.f32 %v871, 0.0
    %v885 = vmax.f32 %v874, 0.0
    %v886 = vmax.f32 %v877, 0.0
    %v887 = vld [vmem:[%s8] sm:$0xff]
    %v888 = vld [vmem:[%s8 + $0x8] sm:$0xff]
    %v889 = vld [vmem:[%s8 + $0x10] sm:$0xff]
    %v890 = vld [vmem:[%s8 + $0x18] sm:$0xff]
    %v891 = vld [vmem:[%s9] sm:$0x1]
    %v893 = vperm.slane %v891, 0
    %v896 = vsel %vm207, %v879, 0
    %v899 = vsel %vm207, %v880, 0
    %v902 = vsel %vm207, %v881, 0
    %v905 = vsel %vm207, %v882, 0
    %v908 = vsel %vm207, %v883, 0
    %v911 = vsel %vm207, %v884, 0
    %v914 = vsel %vm207, %v885, 0
    %v917 = vsel %vm207, %v886, 0
    %919 = vmatpush.msra.mxu0 0.0
    %920 = vmatpush.msra.mxu0 0.0
    %921 = vmatpush.msra.mxu0 0.0
    %922 = vmatpush.msra.mxu0 0.0
    %923 = vmatpush.msra.mxu0 0.0
    %924 = vmatpush.msra.mxu0 0.0
    %925 = vmatpush.msra.mxu0 0.0
    %926 = vmatpush.msra.mxu0 0.0
    %927 = vmatpush.msra.mxu0 0.0
    %928 = vmatpush.msra.mxu0 0.0
    %929 = vmatpush.msra.mxu0 0.0
    %930 = vmatpush.msra.mxu0 0.0
    %931 = vmatpush.msra.mxu0 %v890
    %932 = vmatpush.msra.mxu0 %v889
    %933 = vmatpush.msra.mxu0 %v888
    %934 = vmatpush.msra.mxu0 %v887
    %935 = vmatmul.f32.gmra.mxu0 %v896
    %v936 = vpop.f32.mrf.mxu0
    %v937 = vadd.f32 %v893, %v936
    %938 = vmatmul.f32.gmra.mxu0 %v899
    %v939 = vpop.f32.mrf.mxu0
    %v940 = vadd.f32 %v893, %v939
    %941 = vmatmul.f32.gmra.mxu0 %v902
    %v942 = vpop.f32.mrf.mxu0
    %v943 = vadd.f32 %v893, %v942
    %944 = vmatmul.f32.gmra.mxu0 %v905
    %v945 = vpop.f32.mrf.mxu0
    %v946 = vadd.f32 %v893, %v945
    %947 = vmatmul.f32.gmra.mxu0 %v908
    %v948 = vpop.f32.mrf.mxu0
    %v949 = vadd.f32 %v893, %v948
    %950 = vmatmul.f32.gmra.mxu0 %v911
    %v951 = vpop.f32.mrf.mxu0
    %v952 = vadd.f32 %v893, %v951
    %953 = vmatmul.f32.gmra.mxu0 %v914
    %v954 = vpop.f32.mrf.mxu0
    %v955 = vadd.f32 %v893, %v954
    %956 = vmatmul.f32.gmra.mxu0 %v917
    %v957 = vpop.f32.mrf.mxu0
    %v958 = vadd.f32 %v893, %v957
    %959 = vdwg.mxu0
    %v960 = vld [vmem:[%s13] sm:$0x1]
    %v961 = vadd.f32 %v960, 1e-05
    %v962 = vrsqrt.pop %v961
    %v963 = vmul.f32 %v962, %v961
    %v964 = vmul.f32 %v963, %v962
    %v965 = vmul.f32 0.5, %v964
    %v966 = vsub.f32 1.5, %v965
    %v967 = vmul.f32 %v962, %v966
    %vm968 = vweird.f32 %v961
    %vm969 = vweird.f32 %v962
    %vm970 = vmor %vm968, %vm969
    %v971 = vsel %vm970, %v962, %v967
    %v972 = vld [vmem:[%s12] sm:$0x1]
    %v974 = vperm.slane %v972, 0
    %v976 = vsub.f32 %v937, %v974
    %v977 = vsub.f32 %v940, %v974
    %v978 = vsub.f32 %v943, %v974
    %v979 = vsub.f32 %v946, %v974
    %v980 = vsub.f32 %v949, %v974
    %v981 = vsub.f32 %v952, %v974
    %v982 = vsub.f32 %v955, %v974
    %v983 = vsub.f32 %v958, %v974
    %v985 = vperm.slane %v971, 0
    %v987 = vmul.f32 %v976, %v985
    %v988 = vmul.f32 %v977, %v985
    %v989 = vmul.f32 %v978, %v985
    %v990 = vmul.f32 %v979, %v985
    %v991 = vmul.f32 %v980, %v985
    %v992 = vmul.f32 %v981, %v985
    %v993 = vmul.f32 %v982, %v985
    %v994 = vmul.f32 %v983, %v985
    %v995 = vld [vmem:[%s10] sm:$0x1]
    %v997 = vperm.slane %v995, 0
    %v999 = vmul.f32 %v987, %v997
    %v1000 = vmul.f32 %v988, %v997
    %v1001 = vmul.f32 %v989, %v997
    %v1002 = vmul.f32 %v990, %v997
    %v1003 = vmul.f32 %v991, %v997
    %v1004 = vmul.f32 %v992, %v997
    %v1005 = vmul.f32 %v993, %v997
    %v1006 = vmul.f32 %v994, %v997
    %v1007 = vld [vmem:[%s11] sm:$0x1]
    %v1009 = vperm.slane %v1007, 0
    %v1011 = vadd.f32 %v999, %v1009
    %v1012 = vadd.f32 %v1000, %v1009
    %v1013 = vadd.f32 %v1001, %v1009
    %v1014 = vadd.f32 %v1002, %v1009
    %v1015 = vadd.f32 %v1003, %v1009
    %v1016 = vadd.f32 %v1004, %v1009
    %v1017 = vadd.f32 %v1005, %v1009
    %v1018 = vadd.f32 %v1006, %v1009
    %v1019 = vadd.f32 %v1011, %v798
    %v1020 = vadd.f32 %v1012, %v799
    %v1021 = vadd.f32 %v1013, %v800
    %v1022 = vadd.f32 %v1014, %v801
    %v1023 = vadd.f32 %v1015, %v802
    %v1024 = vadd.f32 %v1016, %v803
    %v1025 = vadd.f32 %v1017, %v804
    %v1026 = vadd.f32 %v1018, %v805
    %v1027 = vld [vmem:[%s14] sm:$0xff]
    %v1028 = vld [vmem:[%s14 + $0x8] sm:$0xff]
    %v1029 = vld [vmem:[%s14 + $0x10] sm:$0xff]
    %v1030 = vld [vmem:[%s14 + $0x18] sm:$0xff]
    %v1031 = vld [vmem:[%s16] sm:$0x1]
    %v1033 = vperm.slane %v1031, 0
    %v1036 = vsel %vm207, %v1019, 0
    %v1039 = vsel %vm207, %v1020, 0
    %v1042 = vsel %vm207, %v1021, 0
    %v1045 = vsel %vm207, %v1022, 0
    %v1048 = vsel %vm207, %v1023, 0
    %v1051 = vsel %vm207, %v1024, 0
    %v1054 = vsel %vm207, %v1025, 0
    %v1057 = vsel %vm207, %v1026, 0
    %1059 = vmatpush.msra.mxu0 0.0
    %1060 = vmatpush.msra.mxu0 0.0
    %1061 = vmatpush.msra.mxu0 0.0
    %1062 = vmatpush.msra.mxu0 0.0
    %1063 = vmatpush.msra.mxu0 0.0
    %1064 = vmatpush.msra.mxu0 0.0
    %1065 = vmatpush.msra.mxu0 0.0
    %1066 = vmatpush.msra.mxu0 0.0
    %1067 = vmatpush.msra.mxu0 0.0
    %1068 = vmatpush.msra.mxu0 0.0
    %1069 = vmatpush.msra.mxu0 0.0
    %1070 = vmatpush.msra.mxu0 0.0
    %1071 = vmatpush.msra.mxu0 %v1030
    %1072 = vmatpush.msra.mxu0 %v1029
    %1073 = vmatpush.msra.mxu0 %v1028
    %1074 = vmatpush.msra.mxu0 %v1027
    %1075 = vmatmul.f32.gmra.mxu0 %v1036
    %v1076 = vpop.f32.mrf.mxu0
    %v1077 = vadd.f32 %v1033, %v1076
    %1078 = vmatmul.f32.gmra.mxu0 %v1039
    %v1079 = vpop.f32.mrf.mxu0
    %v1080 = vadd.f32 %v1033, %v1079
    %1081 = vmatmul.f32.gmra.mxu0 %v1042
    %v1082 = vpop.f32.mrf.mxu0
    %v1083 = vadd.f32 %v1033, %v1082
    %1084 = vmatmul.f32.gmra.mxu0 %v1045
    %v1085 = vpop.f32.mrf.mxu0
    %v1086 = vadd.f32 %v1033, %v1085
    %1087 = vmatmul.f32.gmra.mxu0 %v1048
    %v1088 = vpop.f32.mrf.mxu0
    %v1089 = vadd.f32 %v1033, %v1088
    %1090 = vmatmul.f32.gmra.mxu0 %v1051
    %v1091 = vpop.f32.mrf.mxu0
    %v1092 = vadd.f32 %v1033, %v1091
    %1093 = vmatmul.f32.gmra.mxu0 %v1054
    %v1094 = vpop.f32.mrf.mxu0
    %v1095 = vadd.f32 %v1033, %v1094
    %1096 = vmatmul.f32.gmra.mxu0 %v1057
    %v1097 = vpop.f32.mrf.mxu0
    %v1098 = vadd.f32 %v1033, %v1097
    %1099 = vdwg.mxu0
    %v1100 = vld [vmem:[%s15] sm:$0xff]
    %v1101 = vld [vmem:[%s15 + $0x8] sm:$0xff]
    %v1102 = vld [vmem:[%s15 + $0x10] sm:$0xff]
    %v1103 = vld [vmem:[%s15 + $0x18] sm:$0xff]
    %1104 = vmatpush.msra.mxu0 0.0
    %1105 = vmatpush.msra.mxu0 0.0
    %1106 = vmatpush.msra.mxu0 0.0
    %1107 = vmatpush.msra.mxu0 0.0
    %1108 = vmatpush.msra.mxu0 0.0
    %1109 = vmatpush.msra.mxu0 0.0
    %1110 = vmatpush.msra.mxu0 0.0
    %1111 = vmatpush.msra.mxu0 0.0
    %1112 = vmatpush.msra.mxu0 0.0
    %1113 = vmatpush.msra.mxu0 0.0
    %1114 = vmatpush.msra.mxu0 0.0
    %1115 = vmatpush.msra.mxu0 0.0
    %1116 = vmatpush.msra.mxu0 %v1103
    %1117 = vmatpush.msra.mxu0 %v1102
    %1118 = vmatpush.msra.mxu0 %v1101
    %1119 = vmatpush.msra.mxu0 %v1100
    %1120 = vmatmul.f32.gmra.mxu0 %v278
    %v1121 = vpop.f32.mrf.mxu0
    %v1122 = vadd.f32 0.0, %v1121
    %1123 = vdwg.mxu0
    %v1124 = vadd.f32 %v1077, %v1122
    %v1125 = vxor.u32 %v1124, 2147483648
    %v1126 = vmul.f32 %v1125, 1.442695
    %v1127 = vpow.pop %v1126
    %v1128 = vadd.f32 %v1127, 1.0
    %v1129 = vrcp.pop %v1128
    %v1130 = vmul.f32 %v1128, %v1129
    %v1131 = vsub.f32 1.0, %v1130
    %v1132 = vmul.f32 %v1129, %v1131
    %v1133 = vadd.f32 %v1129, %v1132
    %vm1134 = vweird.f32 %v1128
    %vm1135 = vweird.f32 %v1129
    %vm1136 = vmor %vm1134, %vm1135
    %v1137 = vsel %vm1136, %v1129, %v1133
    %v1138 = vand.u32 2147483647, %v1128
    %vm1139 = vcmp.eq.f32.partialorder %v1138, 8.507059e+37
    %v1140 = vand.u32 %v1128, 2147483648
    %v1141 = vor.u32 1.1754944e-38, %v1140
    %v1142 = vsel %vm1139, %v1141, %v1137
    %v1143 = vmul.f32 1.0, %v1142
    %v1144 = vtanh.pop %v1124
    %v1145 = vmul.f32 %v1143, 0.0
    %1147 = vrot.lane.b32.xlu0 %v1144, 64
    %v1148 = vpop.permute.xlu0 %1147
    %v1150 = vmul.f32 %v1143, %v1148
    %1152 = vrot.lane.b32.xlu0 %v1150, 32
    %v1153 = vpop.permute.xlu0 %1152
    %v1155 = vadd.f32 %v1145, %v1153
    %v1156 = vtanh.pop %v1155
    %1158 = vrot.lane.b32.xlu0 %v1156, 64
    %v1159 = vpop.permute.xlu0 %1158
    %v1161 = vmul.f32 %v1143, %v1159
    %1163 = vrot.lane.b32.xlu0 %v1161, 32
    %v1164 = vpop.permute.xlu0 %1163
    %v1165 = vsel %vm207, %v1164, 0
    %1167 = vmatpush.msra.mxu0 0.0
    %1168 = vmatpush.msra.mxu0 0.0
    %1169 = vmatpush.msra.mxu0 0.0
    %1170 = vmatpush.msra.mxu0 0.0
    %1171 = vmatpush.msra.mxu0 0.0
    %1172 = vmatpush.msra.mxu0 0.0
    %1173 = vmatpush.msra.mxu0 0.0
    %1174 = vmatpush.msra.mxu0 0.0
    %1175 = vmatpush.msra.mxu0 0.0
    %1176 = vmatpush.msra.mxu0 0.0
    %1177 = vmatpush.msra.mxu0 0.0
    %1178 = vmatpush.msra.mxu0 0.0
    %1179 = vmatpush.msra.mxu0 %v1103
    %1180 = vmatpush.msra.mxu0 %v1102
    %1181 = vmatpush.msra.mxu0 %v1101
    %1182 = vmatpush.msra.mxu0 %v1100
    %1183 = vmatmul.f32.gmra.mxu0 %v1165
    %v1184 = vpop.f32.mrf.mxu0
    %v1185 = vadd.f32 0.0, %v1184
    %1186 = vdwg.mxu0
    %v1187 = vadd.f32 %v1080, %v1185
    %v1188 = vxor.u32 %v1187, 2147483648
    %v1189 = vmul.f32 %v1188, 1.442695
    %v1190 = vpow.pop %v1189
    %v1191 = vadd.f32 %v1190, 1.0
    %v1192 = vrcp.pop %v1191
    %v1193 = vmul.f32 %v1191, %v1192
    %v1194 = vsub.f32 1.0, %v1193
    %v1195 = vmul.f32 %v1192, %v1194
    %v1196 = vadd.f32 %v1192, %v1195
    %vm1197 = vweird.f32 %v1191
    %vm1198 = vweird.f32 %v1192
    %vm1199 = vmor %vm1197, %vm1198
    %v1200 = vsel %vm1199, %v1192, %v1196
    %v1201 = vand.u32 2147483647, %v1191
    %vm1202 = vcmp.eq.f32.partialorder %v1201, 8.507059e+37
    %v1203 = vand.u32 %v1191, 2147483648
    %v1204 = vor.u32 1.1754944e-38, %v1203
    %v1205 = vsel %vm1202, %v1204, %v1200
    %v1206 = vmul.f32 1.0, %v1205
    %v1207 = vtanh.pop %v1187
    %v1208 = vmul.f32 %v1206, %v1155
    %1210 = vrot.lane.b32.xlu0 %v1207, 64
    %v1211 = vpop.permute.xlu0 %1210
    %v1213 = vmul.f32 %v1206, %v1211
    %1215 = vrot.lane.b32.xlu0 %v1213, 32
    %v1216 = vpop.permute.xlu0 %1215
    %v1218 = vadd.f32 %v1208, %v1216
    %v1219 = vtanh.pop %v1218
    %1221 = vrot.lane.b32.xlu0 %v1219, 64
    %v1222 = vpop.permute.xlu0 %1221
    %v1224 = vmul.f32 %v1206, %v1222
    %1226 = vrot.lane.b32.xlu0 %v1224, 32
    %v1227 = vpop.permute.xlu0 %1226
    %v1228 = vsel %vm207, %v1227, 0
    %1230 = vmatpush.msra.mxu0 0.0
    %1231 = vmatpush.msra.mxu0 0.0
    %1232 = vmatpush.msra.mxu0 0.0
    %1233 = vmatpush.msra.mxu0 0.0
    %1234 = vmatpush.msra.mxu0 0.0
    %1235 = vmatpush.msra.mxu0 0.0
    %1236 = vmatpush.msra.mxu0 0.0
    %1237 = vmatpush.msra.mxu0 0.0
    %1238 = vmatpush.msra.mxu0 0.0
    %1239 = vmatpush.msra.mxu0 0.0
    %1240 = vmatpush.msra.mxu0 0.0
    %1241 = vmatpush.msra.mxu0 0.0
    %1242 = vmatpush.msra.mxu0 %v1103
    %1243 = vmatpush.msra.mxu0 %v1102
    %1244 = vmatpush.msra.mxu0 %v1101
    %1245 = vmatpush.msra.mxu0 %v1100
    %1246 = vmatmul.f32.gmra.mxu0 %v1228
    %v1247 = vpop.f32.mrf.mxu0
    %v1248 = vadd.f32 0.0, %v1247
    %1249 = vdwg.mxu0
    %v1250 = vadd.f32 %v1083, %v1248
    %v1251 = vxor.u32 %v1250, 2147483648
    %v1252 = vmul.f32 %v1251, 1.442695
    %v1253 = vpow.pop %v1252
    %v1254 = vadd.f32 %v1253, 1.0
    %v1255 = vrcp.pop %v1254
    %v1256 = vmul.f32 %v1254, %v1255
    %v1257 = vsub.f32 1.0, %v1256
    %v1258 = vmul.f32 %v1255, %v1257
    %v1259 = vadd.f32 %v1255, %v1258
    %vm1260 = vweird.f32 %v1254
    %vm1261 = vweird.f32 %v1255
    %vm1262 = vmor %vm1260, %vm1261
    %v1263 = vsel %vm1262, %v1255, %v1259
    %v1264 = vand.u32 2147483647, %v1254
    %vm1265 = vcmp.eq.f32.partialorder %v1264, 8.507059e+37
    %v1266 = vand.u32 %v1254, 2147483648
    %v1267 = vor.u32 1.1754944e-38, %v1266
    %v1268 = vsel %vm1265, %v1267, %v1263
    %v1269 = vmul.f32 1.0, %v1268
    %v1270 = vtanh.pop %v1250
    %v1271 = vmul.f32 %v1269, %v1218
    %1273 = vrot.lane.b32.xlu0 %v1270, 64
    %v1274 = vpop.permute.xlu0 %1273
    %v1276 = vmul.f32 %v1269, %v1274
    %1278 = vrot.lane.b32.xlu0 %v1276, 32
    %v1279 = vpop.permute.xlu0 %1278
    %v1281 = vadd.f32 %v1271, %v1279
    %v1282 = vtanh.pop %v1281
    %1284 = vrot.lane.b32.xlu0 %v1282, 64
    %v1285 = vpop.permute.xlu0 %1284
    %v1287 = vmul.f32 %v1269, %v1285
    %1289 = vrot.lane.b32.xlu0 %v1287, 32
    %v1290 = vpop.permute.xlu0 %1289
    %v1291 = vsel %vm207, %v1290, 0
    %1293 = vmatpush.msra.mxu0 0.0
    %1294 = vmatpush.msra.mxu0 0.0
    %1295 = vmatpush.msra.mxu0 0.0
    %1296 = vmatpush.msra.mxu0 0.0
    %1297 = vmatpush.msra.mxu0 0.0
    %1298 = vmatpush.msra.mxu0 0.0
    %1299 = vmatpush.msra.mxu0 0.0
    %1300 = vmatpush.msra.mxu0 0.0
    %1301 = vmatpush.msra.mxu0 0.0
    %1302 = vmatpush.msra.mxu0 0.0
    %1303 = vmatpush.msra.mxu0 0.0
    %1304 = vmatpush.msra.mxu0 0.0
    %1305 = vmatpush.msra.mxu0 %v1103
    %1306 = vmatpush.msra.mxu0 %v1102
    %1307 = vmatpush.msra.mxu0 %v1101
    %1308 = vmatpush.msra.mxu0 %v1100
    %1309 = vmatmul.f32.gmra.mxu0 %v1291
    %v1310 = vpop.f32.mrf.mxu0
    %v1311 = vadd.f32 0.0, %v1310
    %1312 = vdwg.mxu0
    %v1313 = vadd.f32 %v1086, %v1311
    %v1314 = vxor.u32 %v1313, 2147483648
    %v1315 = vmul.f32 %v1314, 1.442695
    %v1316 = vpow.pop %v1315
    %v1317 = vadd.f32 %v1316, 1.0
    %v1318 = vrcp.pop %v1317
    %v1319 = vmul.f32 %v1317, %v1318
    %v1320 = vsub.f32 1.0, %v1319
    %v1321 = vmul.f32 %v1318, %v1320
    %v1322 = vadd.f32 %v1318, %v1321
    %vm1323 = vweird.f32 %v1317
    %vm1324 = vweird.f32 %v1318
    %vm1325 = vmor %vm1323, %vm1324
    %v1326 = vsel %vm1325, %v1318, %v1322
    %v1327 = vand.u32 2147483647, %v1317
    %vm1328 = vcmp.eq.f32.partialorder %v1327, 8.507059e+37
    %v1329 = vand.u32 %v1317, 2147483648
    %v1330 = vor.u32 1.1754944e-38, %v1329
    %v1331 = vsel %vm1328, %v1330, %v1326
    %v1332 = vmul.f32 1.0, %v1331
    %v1333 = vtanh.pop %v1313
    %v1334 = vmul.f32 %v1332, %v1281
    %1336 = vrot.lane.b32.xlu0 %v1333, 64
    %v1337 = vpop.permute.xlu0 %1336
    %v1339 = vmul.f32 %v1332, %v1337
    %1341 = vrot.lane.b32.xlu0 %v1339, 32
    %v1342 = vpop.permute.xlu0 %1341
    %v1344 = vadd.f32 %v1334, %v1342
    %v1345 = vtanh.pop %v1344
    %1347 = vrot.lane.b32.xlu0 %v1345, 64
    %v1348 = vpop.permute.xlu0 %1347
    %v1350 = vmul.f32 %v1332, %v1348
    %1352 = vrot.lane.b32.xlu0 %v1350, 32
    %v1353 = vpop.permute.xlu0 %1352
    %v1354 = vsel %vm207, %v1353, 0
    %1356 = vmatpush.msra.mxu0 0.0
    %1357 = vmatpush.msra.mxu0 0.0
    %1358 = vmatpush.msra.mxu0 0.0
    %1359 = vmatpush.msra.mxu0 0.0
    %1360 = vmatpush.msra.mxu0 0.0
    %1361 = vmatpush.msra.mxu0 0.0
    %1362 = vmatpush.msra.mxu0 0.0
    %1363 = vmatpush.msra.mxu0 0.0
    %1364 = vmatpush.msra.mxu0 0.0
    %1365 = vmatpush.msra.mxu0 0.0
    %1366 = vmatpush.msra.mxu0 0.0
    %1367 = vmatpush.msra.mxu0 0.0
    %1368 = vmatpush.msra.mxu0 %v1103
    %1369 = vmatpush.msra.mxu0 %v1102
    %1370 = vmatpush.msra.mxu0 %v1101
    %1371 = vmatpush.msra.mxu0 %v1100
    %1372 = vmatmul.f32.gmra.mxu0 %v1354
    %v1373 = vpop.f32.mrf.mxu0
    %v1374 = vadd.f32 0.0, %v1373
    %1375 = vdwg.mxu0
    %v1376 = vadd.f32 %v1089, %v1374
    %v1377 = vxor.u32 %v1376, 2147483648
    %v1378 = vmul.f32 %v1377, 1.442695
    %v1379 = vpow.pop %v1378
    %v1380 = vadd.f32 %v1379, 1.0
    %v1381 = vrcp.pop %v1380
    %v1382 = vmul.f32 %v1380, %v1381
    %v1383 = vsub.f32 1.0, %v1382
    %v1384 = vmul.f32 %v1381, %v1383
    %v1385 = vadd.f32 %v1381, %v1384
    %vm1386 = vweird.f32 %v1380
    %vm1387 = vweird.f32 %v1381
    %vm1388 = vmor %vm1386, %vm1387
    %v1389 = vsel %vm1388, %v1381, %v1385
    %v1390 = vand.u32 2147483647, %v1380
    %vm1391 = vcmp.eq.f32.partialorder %v1390, 8.507059e+37
    %v1392 = vand.u32 %v1380, 2147483648
    %v1393 = vor.u32 1.1754944e-38, %v1392
    %v1394 = vsel %vm1391, %v1393, %v1389
    %v1395 = vmul.f32 1.0, %v1394
    %v1396 = vtanh.pop %v1376
    %v1397 = vmul.f32 %v1395, %v1344
    %1399 = vrot.lane.b32.xlu0 %v1396, 64
    %v1400 = vpop.permute.xlu0 %1399
    %v1402 = vmul.f32 %v1395, %v1400
    %1404 = vrot.lane.b32.xlu0 %v1402, 32
    %v1405 = vpop.permute.xlu0 %1404
    %v1407 = vadd.f32 %v1397, %v1405
    %v1408 = vtanh.pop %v1407
    %1410 = vrot.lane.b32.xlu0 %v1408, 64
    %v1411 = vpop.permute.xlu0 %1410
    %v1413 = vmul.f32 %v1395, %v1411
    %1415 = vrot.lane.b32.xlu0 %v1413, 32
    %v1416 = vpop.permute.xlu0 %1415
    %v1417 = vsel %vm207, %v1416, 0
    %1419 = vmatpush.msra.mxu0 0.0
    %1420 = vmatpush.msra.mxu0 0.0
    %1421 = vmatpush.msra.mxu0 0.0
    %1422 = vmatpush.msra.mxu0 0.0
    %1423 = vmatpush.msra.mxu0 0.0
    %1424 = vmatpush.msra.mxu0 0.0
    %1425 = vmatpush.msra.mxu0 0.0
    %1426 = vmatpush.msra.mxu0 0.0
    %1427 = vmatpush.msra.mxu0 0.0
    %1428 = vmatpush.msra.mxu0 0.0
    %1429 = vmatpush.msra.mxu0 0.0
    %1430 = vmatpush.msra.mxu0 0.0
    %1431 = vmatpush.msra.mxu0 %v1103
    %1432 = vmatpush.msra.mxu0 %v1102
    %1433 = vmatpush.msra.mxu0 %v1101
    %1434 = vmatpush.msra.mxu0 %v1100
    %1435 = vmatmul.f32.gmra.mxu0 %v1417
    %v1436 = vpop.f32.mrf.mxu0
    %v1437 = vadd.f32 0.0, %v1436
    %1438 = vdwg.mxu0
    %v1439 = vadd.f32 %v1092, %v1437
    %v1440 = vxor.u32 %v1439, 2147483648
    %v1441 = vmul.f32 %v1440, 1.442695
    %v1442 = vpow.pop %v1441
    %v1443 = vadd.f32 %v1442, 1.0
    %v1444 = vrcp.pop %v1443
    %v1445 = vmul.f32 %v1443, %v1444
    %v1446 = vsub.f32 1.0, %v1445
    %v1447 = vmul.f32 %v1444, %v1446
    %v1448 = vadd.f32 %v1444, %v1447
    %vm1449 = vweird.f32 %v1443
    %vm1450 = vweird.f32 %v1444
    %vm1451 = vmor %vm1449, %vm1450
    %v1452 = vsel %vm1451, %v1444, %v1448
    %v1453 = vand.u32 2147483647, %v1443
    %vm1454 = vcmp.eq.f32.partialorder %v1453, 8.507059e+37
    %v1455 = vand.u32 %v1443, 2147483648
    %v1456 = vor.u32 1.1754944e-38, %v1455
    %v1457 = vsel %vm1454, %v1456, %v1452
    %v1458 = vmul.f32 1.0, %v1457
    %v1459 = vtanh.pop %v1439
    %v1460 = vmul.f32 %v1458, %v1407
    %1462 = vrot.lane.b32.xlu0 %v1459, 64
    %v1463 = vpop.permute.xlu0 %1462
    %v1465 = vmul.f32 %v1458, %v1463
    %1467 = vrot.lane.b32.xlu0 %v1465, 32
    %v1468 = vpop.permute.xlu0 %1467
    %v1470 = vadd.f32 %v1460, %v1468
    %v1471 = vtanh.pop %v1470
    %1473 = vrot.lane.b32.xlu0 %v1471, 64
    %v1474 = vpop.permute.xlu0 %1473
    %v1476 = vmul.f32 %v1458, %v1474
    %1478 = vrot.lane.b32.xlu0 %v1476, 32
    %v1479 = vpop.permute.xlu0 %1478
    %v1480 = vsel %vm207, %v1479, 0
    %1482 = vmatpush.msra.mxu0 0.0
    %1483 = vmatpush.msra.mxu0 0.0
    %1484 = vmatpush.msra.mxu0 0.0
    %1485 = vmatpush.msra.mxu0 0.0
    %1486 = vmatpush.msra.mxu0 0.0
    %1487 = vmatpush.msra.mxu0 0.0
    %1488 = vmatpush.msra.mxu0 0.0
    %1489 = vmatpush.msra.mxu0 0.0
    %1490 = vmatpush.msra.mxu0 0.0
    %1491 = vmatpush.msra.mxu0 0.0
    %1492 = vmatpush.msra.mxu0 0.0
    %1493 = vmatpush.msra.mxu0 0.0
    %1494 = vmatpush.msra.mxu0 %v1103
    %1495 = vmatpush.msra.mxu0 %v1102
    %1496 = vmatpush.msra.mxu0 %v1101
    %1497 = vmatpush.msra.mxu0 %v1100
    %1498 = vmatmul.f32.gmra.mxu0 %v1480
    %v1499 = vpop.f32.mrf.mxu0
    %v1500 = vadd.f32 0.0, %v1499
    %1501 = vdwg.mxu0
    %v1502 = vadd.f32 %v1095, %v1500
    %v1503 = vxor.u32 %v1502, 2147483648
    %v1504 = vmul.f32 %v1503, 1.442695
    %v1505 = vpow.pop %v1504
    %v1506 = vadd.f32 %v1505, 1.0
    %v1507 = vrcp.pop %v1506
    %v1508 = vmul.f32 %v1506, %v1507
    %v1509 = vsub.f32 1.0, %v1508
    %v1510 = vmul.f32 %v1507, %v1509
    %v1511 = vadd.f32 %v1507, %v1510
    %vm1512 = vweird.f32 %v1506
    %vm1513 = vweird.f32 %v1507
    %vm1514 = vmor %vm1512, %vm1513
    %v1515 = vsel %vm1514, %v1507, %v1511
    %v1516 = vand.u32 2147483647, %v1506
    %vm1517 = vcmp.eq.f32.partialorder %v1516, 8.507059e+37
    %v1518 = vand.u32 %v1506, 2147483648
    %v1519 = vor.u32 1.1754944e-38, %v1518
    %v1520 = vsel %vm1517, %v1519, %v1515
    %v1521 = vmul.f32 1.0, %v1520
    %v1522 = vtanh.pop %v1502
    %v1523 = vmul.f32 %v1521, %v1470
    %1525 = vrot.lane.b32.xlu0 %v1522, 64
    %v1526 = vpop.permute.xlu0 %1525
    %v1528 = vmul.f32 %v1521, %v1526
    %1530 = vrot.lane.b32.xlu0 %v1528, 32
    %v1531 = vpop.permute.xlu0 %1530
    %v1533 = vadd.f32 %v1523, %v1531
    %v1534 = vtanh.pop %v1533
    %1536 = vrot.lane.b32.xlu0 %v1534, 64
    %v1537 = vpop.permute.xlu0 %1536
    %v1539 = vmul.f32 %v1521, %v1537
    %1541 = vrot.lane.b32.xlu0 %v1539, 32
    %v1542 = vpop.permute.xlu0 %1541
    %v1543 = vsel %vm207, %v1542, 0
    %1545 = vmatpush.msra.mxu0 0.0
    %1546 = vmatpush.msra.mxu0 0.0
    %1547 = vmatpush.msra.mxu0 0.0
    %1548 = vmatpush.msra.mxu0 0.0
    %1549 = vmatpush.msra.mxu0 0.0
    %1550 = vmatpush.msra.mxu0 0.0
    %1551 = vmatpush.msra.mxu0 0.0
    %1552 = vmatpush.msra.mxu0 0.0
    %1553 = vmatpush.msra.mxu0 0.0
    %1554 = vmatpush.msra.mxu0 0.0
    %1555 = vmatpush.msra.mxu0 0.0
    %1556 = vmatpush.msra.mxu0 0.0
    %1557 = vmatpush.msra.mxu0 %v1103
    %1558 = vmatpush.msra.mxu0 %v1102
    %1559 = vmatpush.msra.mxu0 %v1101
    %1560 = vmatpush.msra.mxu0 %v1100
    %1561 = vmatmul.f32.gmra.mxu0 %v1543
    %v1562 = vpop.f32.mrf.mxu0
    %v1563 = vadd.f32 0.0, %v1562
    %1564 = vdwg.mxu0
    %v1565 = vadd.f32 %v1098, %v1563
    %v1566 = vxor.u32 %v1565, 2147483648
    %v1567 = vmul.f32 %v1566, 1.442695
    %v1568 = vpow.pop %v1567
    %v1569 = vadd.f32 %v1568, 1.0
    %v1570 = vrcp.pop %v1569
    %v1571 = vmul.f32 %v1569, %v1570
    %v1572 = vsub.f32 1.0, %v1571
    %v1573 = vmul.f32 %v1570, %v1572
    %v1574 = vadd.f32 %v1570, %v1573
    %vm1575 = vweird.f32 %v1569
    %vm1576 = vweird.f32 %v1570
    %vm1577 = vmor %vm1575, %vm1576
    %v1578 = vsel %vm1577, %v1570, %v1574
    %v1579 = vand.u32 2147483647, %v1569
    %vm1580 = vcmp.eq.f32.partialorder %v1579, 8.507059e+37
    %v1581 = vand.u32 %v1569, 2147483648
    %v1582 = vor.u32 1.1754944e-38, %v1581
    %v1583 = vsel %vm1580, %v1582, %v1578
    %v1584 = vmul.f32 1.0, %v1583
    %v1585 = vtanh.pop %v1565
    %v1586 = vmul.f32 %v1584, %v1533
    %1588 = vrot.lane.b32.xlu0 %v1585, 64
    %v1589 = vpop.permute.xlu0 %1588
    %v1591 = vmul.f32 %v1584, %v1589
    %1593 = vrot.lane.b32.xlu0 %v1591, 32
    %v1594 = vpop.permute.xlu0 %1593
    %v1596 = vadd.f32 %v1586, %v1594
    %v1597 = vtanh.pop %v1596
    %1599 = vrot.lane.b32.xlu0 %v1597, 64
    %v1600 = vpop.permute.xlu0 %1599
    %v1602 = vmul.f32 %v1584, %v1600
    %v1603 = vld [vmem:[#allocation4] sm:$0xff]
    %v1604 = vld [vmem:[#allocation4 + $0x8] sm:$0xff]
    %v1605 = vld [vmem:[#allocation4 + $0x10] sm:$0xff]
    %v1606 = vld [vmem:[#allocation4 + $0x18] sm:$0xff]
    %v1607 = vld [vmem:[%s18] sm:$0x1]
    %v1609 = vperm.slane %v1607, 0
    %1612 = vrot.lane.b32.xlu0 %v1602, 32
    %v1613 = vpop.permute.xlu0 %1612
    %v1614 = vsel %vm207, %v1613, 0
    %1616 = vmatpush.msra.mxu0 0.0
    %1617 = vmatpush.msra.mxu0 0.0
    %1618 = vmatpush.msra.mxu0 0.0
    %1619 = vmatpush.msra.mxu0 0.0
    %1620 = vmatpush.msra.mxu0 0.0
    %1621 = vmatpush.msra.mxu0 0.0
    %1622 = vmatpush.msra.mxu0 0.0
    %1623 = vmatpush.msra.mxu0 0.0
    %1624 = vmatpush.msra.mxu0 0.0
    %1625 = vmatpush.msra.mxu0 0.0
    %1626 = vmatpush.msra.mxu0 0.0
    %1627 = vmatpush.msra.mxu0 0.0
    %1628 = vmatpush.msra.mxu0 %v1606
    %1629 = vmatpush.msra.mxu0 %v1605
    %1630 = vmatpush.msra.mxu0 %v1604
    %1631 = vmatpush.msra.mxu0 %v1603
    %1632 = vmatmul.f32.gmra.mxu0 %v1614
    %v1633 = vpop.f32.mrf.mxu0
    %v1634 = vadd.f32 %v1609, %v1633
    %1635 = vdwg.mxu0
    %v1636 = vmax.f32 %v1634, 0.0
    %v1637 = vld [vmem:[#allocation6] sm:$0xff]
    %v1638 = vld [vmem:[#allocation6 + $0x8] sm:$0xff]
    %v1639 = vld [vmem:[#allocation6 + $0x10] sm:$0xff]
    %v1640 = vld [vmem:[#allocation6 + $0x18] sm:$0xff]
    %v1641 = vld [vmem:[%s20] sm:$0x1]
    %v1643 = vperm.slane %v1641, 0
    %v1646 = vsel %vm207, %v1636, 0
    %1648 = vmatpush.msra.mxu0 0.0
    %1649 = vmatpush.msra.mxu0 0.0
    %1650 = vmatpush.msra.mxu0 0.0
    %1651 = vmatpush.msra.mxu0 0.0
    %1652 = vmatpush.msra.mxu0 0.0
    %1653 = vmatpush.msra.mxu0 0.0
    %1654 = vmatpush.msra.mxu0 0.0
    %1655 = vmatpush.msra.mxu0 0.0
    %1656 = vmatpush.msra.mxu0 0.0
    %1657 = vmatpush.msra.mxu0 0.0
    %1658 = vmatpush.msra.mxu0 0.0
    %1659 = vmatpush.msra.mxu0 0.0
    %1660 = vmatpush.msra.mxu0 %v1640
    %1661 = vmatpush.msra.mxu0 %v1639
    %1662 = vmatpush.msra.mxu0 %v1638
    %1663 = vmatpush.msra.mxu0 %v1637
    %1664 = vmatmul.f32.gmra.mxu0 %v1646
    %v1665 = vpop.f32.mrf.mxu0
    %v1666 = vadd.f32 %v1643, %v1665
    %1667 = vdwg.mxu0
    %v1668 = vld [vmem:[%s24] sm:$0x1]
    %v1669 = vadd.f32 %v1668, 1e-05
    %v1670 = vrsqrt.pop %v1669
    %v1671 = vmul.f32 %v1670, %v1669
    %v1672 = vmul.f32 %v1671, %v1670
    %v1673 = vmul.f32 0.5, %v1672
    %v1674 = vsub.f32 1.5, %v1673
    %v1675 = vmul.f32 %v1670, %v1674
    %vm1676 = vweird.f32 %v1669
    %vm1677 = vweird.f32 %v1670
    %vm1678 = vmor %vm1676, %vm1677
    %v1679 = vsel %vm1678, %v1670, %v1675
    %v1680 = vld [vmem:[%s23] sm:$0x1]
    %v1682 = vperm.slane %v1680, 0
    %v1684 = vsub.f32 %v1666, %v1682
    %v1686 = vperm.slane %v1679, 0
    %v1688 = vmul.f32 %v1684, %v1686
    %v1689 = vld [vmem:[%s21] sm:$0x1]
    %v1691 = vperm.slane %v1689, 0
    %v1693 = vmul.f32 %v1688, %v1691
    %v1694 = vld [vmem:[%s22] sm:$0x1]
    %v1696 = vperm.slane %v1694, 0
    %v1698 = vadd.f32 %v1693, %v1696
    %v1700 = vadd.f32 %v1698, %v1613
    %v1701 = vld [vmem:[%s25] sm:$0x1]
    %v1703 = vperm.slane %v1701, 0
    %v1705 = vmul.f32 %v1700, %v1703
    %v1706 = vsel %vm207, %v1705, 0.0
    %1707 = vadd.xlane.f32.xlu0 %v1706
    %v1708 = vpop.xlane.xlu0 %1707
    %v1709 = vld [vmem:[#allocation3] sm:$0x1]
    %v1711 = vperm.slane %v1709, 0
    %v1713 = vadd.f32 %v1708, %v1711
    %vm1714 = vcmask 7168
    %1715 = vst.msk [vmem:[%s27] sm:$0xff] %vm1714, %v1713
    // Predicated region
    $region118: #{model_forward.1} parent=1 // pred_check
      _
    $region119: #{model_forward.1} parent=1 // pred_check_branch
      %1717 = sbr.rel (0) target = $region121
    $region120: #{model_forward.1} parent=1 // pred_region
      _
    $region121: #{model_forward.1} parent=1 // pred_fallthru
      _
    // Predicated region
    $region122: #{model_forward.1} parent=1 // pred_check
      _
    $region123: #{model_forward.1} parent=1 // pred_check_branch
      %1719 = sbr.rel (0) target = $region125
    $region124: #{model_forward.1} parent=1 // pred_region
      _
    $region125: #{model_forward.1} parent=1 // pred_fallthru
      _
    %1720 = vsyncpa [#allocation5], 1
    %1721 = vsyncpa [#allocation7], 1

</llo_original>
